<compile_context>
chip_gen: v6e
topology: v6e:2x2x1
jax: 0.10.0
libtpu: 0.0.40
codegen_flags: <defaults>
</compile_context>

<pallas_src>
import jax
import jax.numpy as jnp
from jax import lax
from jax.experimental import pallas as pl
from jax.experimental.pallas import tpu as pltpu


def rnn_seq_kernel(x_ref, h0_ref, w1_ref, b1_ref, w2_ref, b2_ref,
                   out_ref, hist_ref, xc_ref):
    T = x_ref.shape[0]
    I = x_ref.shape[2]
    H = h0_ref.shape[1]

    # Weights / biases: loaded from VMEM once, live in vregs across all T steps.
    w1 = w1_ref[...]          # (I+H, P)  cols [0:H]=i2h.T, [H:H+O]=i2o.T, rest 0
    b1 = b1_ref[...]          # (1,   P)  [i2h_b | i2o_b | 0]
    w2 = w2_ref[...]          # (P,   P)  rows[0:H+O] x cols[0:O] = o2o.T, rest 0
    b2 = b2_ref[...]          # (1,   P)  [o2o_b | -1e30 ...]  (pad lanes killed)

    def step(t, h):
        # Stage the [x | h] tile -> single K = I+H contraction (one MXU pass).
        xc_ref[:, :I] = x_ref[t]
        xc_ref[:, I:] = h
        xc = xc_ref[...]                                        # (B, I+H)

        # s1 = [ i2h(cat(x,h)) | i2o(cat(x,h)) | 0-pad ]  -> lane-dense (B, P)
        s1 = jnp.dot(xc, w1, preferred_element_type=jnp.float32) + b1

        # s1 is exactly cat(h_new, o1) (zero pad lanes hit zero rows of w2),
        # so o2o is one dot.  Padded logit lanes pick up the -1e30 bias.
        o2 = jnp.dot(s1, w2, preferred_element_type=jnp.float32) + b2

        # LogSoftmax(dim=1), numerically stable, f32.  Padded lanes: exp -> 0.
        m = jnp.max(o2, axis=-1, keepdims=True)
        lse = jnp.log(jnp.sum(jnp.exp(o2 - m), axis=-1, keepdims=True)) + m

        out_ref[t] = o2 - lse      # lane-dense store; lanes [O:] sliced off later
        hist_ref[t] = s1           # lanes [0:H] = new history; rest sliced off
        return s1[:, :H]           # hidden-state carry stays in vregs

    lax.fori_loop(0, T, step, h0_ref[...], unroll=True)


def pack_params(params, input_size, lane_pad=128):
    """One-time prep: transpose, fuse and lane-pad the PyTorch Linear weights.

    Returns dict with
      w1: (I+H, P)   [ i2h_w.T | i2o_w.T | 0 ]          (P = lanes padded to 128)
      b1: (1,   P)   [ i2h_b   | i2o_b   | 0 ]
      w2: (P,   P)   rows [0:H+O], cols [0:O] = o2o_w.T, rest 0
      b2: (1,   P)   [ o2o_b | -1e30 ... ]   (pad lanes excluded from softmax)
    """
    I = input_size
    i2h_w = params["i2h_w"]            # (H, I+H)
    i2o_w = params["i2o_w"]            # (O, I+H)
    o2o_w = params["o2o_w"]            # (O, H+O)
    H = i2h_w.shape[0]
    O = i2o_w.shape[0]
    N1 = H + O
    P = max(lane_pad, ((N1 + lane_pad - 1) // lane_pad) * lane_pad)

    w1 = jnp.zeros((I + H, P), jnp.float32)
    w1 = w1.at[:, :H].set(i2h_w.T)
    w1 = w1.at[:, H:N1].set(i2o_w.T)

    b1 = jnp.zeros((1, P), jnp.float32)
    b1 = b1.at[0, :H].set(params["i2h_b"])
    b1 = b1.at[0, H:N1].set(params["i2o_b"])

    w2 = jnp.zeros((P, P), jnp.float32)
    w2 = w2.at[:N1, :O].set(o2o_w.T)

    b2 = jnp.full((1, P), -1e30, jnp.float32)   # pad logits -> exp underflows to 0
    b2 = b2.at[0, :O].set(params["o2o_b"])

    return dict(w1=w1, b1=b1, w2=w2, b2=b2, I=I, H=H, O=O, P=P)


def rnn_sequence_forward(xs, h0, packed):
    """xs: [T, B, I], h0: [B, H] -> (log_probs [T, B, O], histories [T, B, H])."""
    T, B, I = xs.shape
    H = h0.shape[1]
    O = packed["O"]
    P = packed["P"]

    out_pad, hist_pad = pl.pallas_call(
        rnn_seq_kernel,
        out_shape=(jax.ShapeDtypeStruct((T, B, P), jnp.float32),
                   jax.ShapeDtypeStruct((T, B, P), jnp.float32)),
        # No grid: everything is whole-array VMEM resident (single invocation,
        # single input DMA per operand, single writeback DMA per output).
        scratch_shapes=[pltpu.VMEM((B, I + H), jnp.float32)],   # [x | h] staging
    )(xs, h0, packed["w1"], packed["b1"], packed["w2"], packed["b2"])

    # Slice the lane-padded slabs back to the module's real widths.
    return out_pad[..., :O], hist_pad[..., :H]


def rnn_forward(x, h, packed):
    """Single-step forward matching the PyTorch module: (log_probs, history)."""
    lp, hs = rnn_sequence_forward(x[None], h, packed)
    return lp[0], hs[0]


def init_params(key, input_size, history_size, output_size):
    """Deterministic init mimicking nn.Linear's uniform(-1/sqrt(fan_in), ...)."""
    ks = jax.random.split(key, 6)

    def linear(kw, kb, fan_out, fan_in):
        bound = 1.0 / (fan_in ** 0.5)
        w = jax.random.uniform(kw, (fan_out, fan_in), jnp.float32, -bound, bound)
        b = jax.random.uniform(kb, (fan_out,), jnp.float32, -bound, bound)
        return w, b

    i2h_w, i2h_b = linear(ks[0], ks[1], history_size, input_size + history_size)
    i2o_w, i2o_b = linear(ks[2], ks[3], output_size, input_size + history_size)
    o2o_w, o2o_b = linear(ks[4], ks[5], output_size, history_size + output_size)
    return dict(i2h_w=i2h_w, i2h_b=i2h_b,
                i2o_w=i2o_w, i2o_b=i2o_b,
                o2o_w=o2o_w, o2o_b=o2o_b)


def reference_step(x, h, params):
    """Pure-JAX single step matching the PyTorch forward exactly."""
    xc = jnp.concatenate([x, h], axis=1)
    h_new = xc @ params["i2h_w"].T + params["i2h_b"]
    o = xc @ params["i2o_w"].T + params["i2o_b"]
    oc = jnp.concatenate([h_new, o], axis=1)
    o2 = oc @ params["o2o_w"].T + params["o2o_b"]
    return jax.nn.log_softmax(o2, axis=1), h_new


if __name__ == "__main__":
    # Small shapes consistent with the module (one-hot char input, hidden history).
    B, INPUT, HIST, OUT, T = 2, 16, 32, 20, 8

    key = jax.random.PRNGKey(0)
    kx, kh, kp = jax.random.split(key, 3)
    xs = jax.random.normal(kx, (T, B, INPUT), jnp.float32)
    h0 = jax.random.normal(kh, (B, HIST), jnp.float32)
    params = init_params(kp, INPUT, HIST, OUT)

    packed = pack_params(params, INPUT)   # one-time weight packing (hoisted)

    # Fused sequence forward: one pallas_call for all T steps.
    log_probs, histories = rnn_sequence_forward(xs, h0, packed)
    jax.block_until_ready((log_probs, histories))

    # Reference: unrolled per-step loop with the PyTorch-equivalent math.
    ref_lp, ref_h = [], []
    h = h0
    for t in range(T):
        lp, h = reference_step(xs[t], h, params)
        ref_lp.append(lp)
        ref_h.append(h)
    ref_lp = jnp.stack(ref_lp)
    ref_h = jnp.stack(ref_h)

    assert jnp.allclose(log_probs, ref_lp, atol=1e-5, rtol=1e-5)
    assert jnp.allclose(histories, ref_h, atol=1e-5, rtol=1e-5)

    # Single-step API (module.forward semantics) also checked.
    lp1, h1 = rnn_forward(xs[0], h0, packed)
    rlp1, rh1 = reference_step(xs[0], h0, params)
    assert jnp.allclose(lp1, rlp1, atol=1e-5, rtol=1e-5)
    assert jnp.allclose(h1, rh1, atol=1e-5, rtol=1e-5)

    print("KERNEL_OK")
</pallas_src>

<mosaic_0001>
module attributes {stable_mosaic.version = 11 : i64} {
  func.func @rnn_seq_kernel(%arg0: memref<8x2x16xf32, #tpu.memory_space<vmem>>, %arg1: memref<2x32xf32, #tpu.memory_space<vmem>>, %arg2: memref<48x128xf32, #tpu.memory_space<vmem>>, %arg3: memref<1x128xf32, #tpu.memory_space<vmem>>, %arg4: memref<128x128xf32, #tpu.memory_space<vmem>>, %arg5: memref<1x128xf32, #tpu.memory_space<vmem>>, %arg6: memref<8x2x128xf32, #tpu.memory_space<vmem>>, %arg7: memref<8x2x128xf32, #tpu.memory_space<vmem>>, %arg8: memref<2x48xf32, #tpu.memory_space<vmem>>) attributes {dimension_semantics = [], scalar_prefetch = 0 : i64, scratch_operands = 1 : i64, tpu.core_type = #tpu.core_type<tc>} {
    %c0 = arith.constant 0 : index
    %c0_0 = arith.constant 0 : index
    %0 = vector.load %arg2[%c0, %c0_0] : memref<48x128xf32, #tpu.memory_space<vmem>>, vector<48x128xf32>
    %c0_1 = arith.constant 0 : index
    %c0_2 = arith.constant 0 : index
    %1 = vector.load %arg3[%c0_1, %c0_2] : memref<1x128xf32, #tpu.memory_space<vmem>>, vector<1x128xf32>
    %c0_3 = arith.constant 0 : index
    %c0_4 = arith.constant 0 : index
    %2 = vector.load %arg4[%c0_3, %c0_4] : memref<128x128xf32, #tpu.memory_space<vmem>>, vector<128x128xf32>
    %c0_5 = arith.constant 0 : index
    %c0_6 = arith.constant 0 : index
    %3 = vector.load %arg5[%c0_5, %c0_6] : memref<1x128xf32, #tpu.memory_space<vmem>>, vector<1x128xf32>
    %c0_7 = arith.constant 0 : index
    %c0_8 = arith.constant 0 : index
    %4 = vector.load %arg1[%c0_7, %c0_8] : memref<2x32xf32, #tpu.memory_space<vmem>>, vector<2x32xf32>
    %c0_i32 = arith.constant 0 : i32
    %5 = arith.index_cast %c0_i32 : i32 to index
    %c0_9 = arith.constant 0 : index
    %c0_10 = arith.constant 0 : index
    %6 = vector.load %arg0[%5, %c0_9, %c0_10] : memref<8x2x16xf32, #tpu.memory_space<vmem>>, vector<1x2x16xf32>
    %7 = vector.shape_cast %6 : vector<1x2x16xf32> to vector<2x16xf32>
    %c0_11 = arith.constant 0 : index
    %c0_12 = arith.constant 0 : index
    %8 = vector.load %arg8[%c0_11, %c0_12] : memref<2x48xf32, #tpu.memory_space<vmem>>, vector<2x16xf32>
    tpu.vector_store %arg8[%c0_11, %c0_12], %7 {strides = array<i32>} : memref<2x48xf32, #tpu.memory_space<vmem>>, vector<2x16xf32>,
    %c0_13 = arith.constant 0 : index
    %c16 = arith.constant 16 : index
    %9 = vector.load %arg8[%c0_13, %c16] : memref<2x48xf32, #tpu.memory_space<vmem>>, vector<2x32xf32>
    tpu.vector_store %arg8[%c0_13, %c16], %4 {strides = array<i32>} : memref<2x48xf32, #tpu.memory_space<vmem>>, vector<2x32xf32>,
    %c0_14 = arith.constant 0 : index
    %c0_15 = arith.constant 0 : index
    %10 = vector.load %arg8[%c0_14, %c0_15] : memref<2x48xf32, #tpu.memory_space<vmem>>, vector<2x48xf32>
    %cst = arith.constant dense<0.000000e+00> : vector<2x128xf32>
    %11 = tpu.matmul %10, %0, %cst {dimension_numbers = #tpu.dot_dimension_numbers<[1], [0], [0], [1], [0, 0, 1, 1], [], []>} : vector<2x48xf32>, vector<48x128xf32>, vector<2x128xf32> -> vector<2x128xf32>
    %12 = vector.broadcast %1 : vector<1x128xf32> to vector<2x128xf32>
    %13 = arith.addf %11, %12 : vector<2x128xf32>
    %cst_16 = arith.constant dense<0.000000e+00> : vector<2x128xf32>
    %14 = tpu.matmul %13, %2, %cst_16 {dimension_numbers = #tpu.dot_dimension_numbers<[1], [0], [0], [1], [0, 0, 1, 1], [], []>} : vector<2x128xf32>, vector<128x128xf32>, vector<2x128xf32> -> vector<2x128xf32>
    %15 = vector.broadcast %3 : vector<1x128xf32> to vector<2x128xf32>
    %16 = arith.addf %14, %15 : vector<2x128xf32>
    %cst_17 = arith.constant dense<0xFF800000> : vector<2xf32>
    %17 = vector.multi_reduction <maximumf>, %16, %cst_17 [1] : vector<2x128xf32> to vector<2xf32>
    %18 = vector.shape_cast %17 : vector<2xf32> to vector<2x1xf32>
    %19 = vector.broadcast %18 : vector<2x1xf32> to vector<2x128xf32>
    %20 = arith.subf %16, %19 : vector<2x128xf32>
    %21 = math.exp %20 : vector<2x128xf32>
    %cst_18 = arith.constant dense<0.000000e+00> : vector<2xf32>
    %22 = vector.multi_reduction <add>, %21, %cst_18 [1] : vector<2x128xf32> to vector<2xf32>
    %23 = vector.shape_cast %22 : vector<2xf32> to vector<2x1xf32>
    %24 = math.log %23 : vector<2x1xf32>
    %25 = arith.addf %24, %18 : vector<2x1xf32>
    %26 = vector.broadcast %25 : vector<2x1xf32> to vector<2x128xf32>
    %27 = arith.subf %16, %26 : vector<2x128xf32>
    %28 = arith.index_cast %c0_i32 : i32 to index
    %c0_19 = arith.constant 0 : index
    %c0_20 = arith.constant 0 : index
    %29 = vector.load %arg6[%28, %c0_19, %c0_20] : memref<8x2x128xf32, #tpu.memory_space<vmem>>, vector<1x2x128xf32>
    %30 = vector.shape_cast %29 : vector<1x2x128xf32> to vector<2x128xf32>
    %31 = vector.shape_cast %27 : vector<2x128xf32> to vector<1x2x128xf32>
    tpu.vector_store %arg6[%28, %c0_19, %c0_20], %31 {strides = array<i32>} : memref<8x2x128xf32, #tpu.memory_space<vmem>>, vector<1x2x128xf32>,
    %32 = arith.index_cast %c0_i32 : i32 to index
    %c0_21 = arith.constant 0 : index
    %c0_22 = arith.constant 0 : index
    %33 = vector.load %arg7[%32, %c0_21, %c0_22] : memref<8x2x128xf32, #tpu.memory_space<vmem>>, vector<1x2x128xf32>
    %34 = vector.shape_cast %33 : vector<1x2x128xf32> to vector<2x128xf32>
    %35 = vector.shape_cast %13 : vector<2x128xf32> to vector<1x2x128xf32>
    tpu.vector_store %arg7[%32, %c0_21, %c0_22], %35 {strides = array<i32>} : memref<8x2x128xf32, #tpu.memory_space<vmem>>, vector<1x2x128xf32>,
    %36 = vector.extract_strided_slice %13 {offsets = [0, 0], sizes = [2, 32], strides = [1, 1]} : vector<2x128xf32> to vector<2x32xf32>
    %c1_i32 = arith.constant 1 : i32
    %37 = arith.index_cast %c1_i32 : i32 to index
    %c0_23 = arith.constant 0 : index
    %c0_24 = arith.constant 0 : index
    %38 = vector.load %arg0[%37, %c0_23, %c0_24] : memref<8x2x16xf32, #tpu.memory_space<vmem>>, vector<1x2x16xf32>
    %39 = vector.shape_cast %38 : vector<1x2x16xf32> to vector<2x16xf32>
    %c0_25 = arith.constant 0 : index
    %c0_26 = arith.constant 0 : index
    %40 = vector.load %arg8[%c0_25, %c0_26] : memref<2x48xf32, #tpu.memory_space<vmem>>, vector<2x16xf32>
    tpu.vector_store %arg8[%c0_25, %c0_26], %39 {strides = array<i32>} : memref<2x48xf32, #tpu.memory_space<vmem>>, vector<2x16xf32>,
    %c0_27 = arith.constant 0 : index
    %c16_28 = arith.constant 16 : index
    %41 = vector.load %arg8[%c0_27, %c16_28] : memref<2x48xf32, #tpu.memory_space<vmem>>, vector<2x32xf32>
    tpu.vector_store %arg8[%c0_27, %c16_28], %36 {strides = array<i32>} : memref<2x48xf32, #tpu.memory_space<vmem>>, vector<2x32xf32>,
    %c0_29 = arith.constant 0 : index
    %c0_30 = arith.constant 0 : index
    %42 = vector.load %arg8[%c0_29, %c0_30] : memref<2x48xf32, #tpu.memory_space<vmem>>, vector<2x48xf32>
    %cst_31 = arith.constant dense<0.000000e+00> : vector<2x128xf32>
    %43 = tpu.matmul %42, %0, %cst_31 {dimension_numbers = #tpu.dot_dimension_numbers<[1], [0], [0], [1], [0, 0, 1, 1], [], []>} : vector<2x48xf32>, vector<48x128xf32>, vector<2x128xf32> -> vector<2x128xf32>
    %44 = vector.broadcast %1 : vector<1x128xf32> to vector<2x128xf32>
    %45 = arith.addf %43, %44 : vector<2x128xf32>
    %cst_32 = arith.constant dense<0.000000e+00> : vector<2x128xf32>
    %46 = tpu.matmul %45, %2, %cst_32 {dimension_numbers = #tpu.dot_dimension_numbers<[1], [0], [0], [1], [0, 0, 1, 1], [], []>} : vector<2x128xf32>, vector<128x128xf32>, vector<2x128xf32> -> vector<2x128xf32>
    %47 = vector.broadcast %3 : vector<1x128xf32> to vector<2x128xf32>
    %48 = arith.addf %46, %47 : vector<2x128xf32>
    %cst_33 = arith.constant dense<0xFF800000> : vector<2xf32>
    %49 = vector.multi_reduction <maximumf>, %48, %cst_33 [1] : vector<2x128xf32> to vector<2xf32>
    %50 = vector.shape_cast %49 : vector<2xf32> to vector<2x1xf32>
    %51 = vector.broadcast %50 : vector<2x1xf32> to vector<2x128xf32>
    %52 = arith.subf %48, %51 : vector<2x128xf32>
    %53 = math.exp %52 : vector<2x128xf32>
    %cst_34 = arith.constant dense<0.000000e+00> : vector<2xf32>
    %54 = vector.multi_reduction <add>, %53, %cst_34 [1] : vector<2x128xf32> to vector<2xf32>
    %55 = vector.shape_cast %54 : vector<2xf32> to vector<2x1xf32>
    %56 = math.log %55 : vector<2x1xf32>
    %57 = arith.addf %56, %50 : vector<2x1xf32>
    %58 = vector.broadcast %57 : vector<2x1xf32> to vector<2x128xf32>
    %59 = arith.subf %48, %58 : vector<2x128xf32>
    %60 = arith.index_cast %c1_i32 : i32 to index
    %c0_35 = arith.constant 0 : index
    %c0_36 = arith.constant 0 : index
    %61 = vector.load %arg6[%60, %c0_35, %c0_36] : memref<8x2x128xf32, #tpu.memory_space<vmem>>, vector<1x2x128xf32>
    %62 = vector.shape_cast %61 : vector<1x2x128xf32> to vector<2x128xf32>
    %63 = vector.shape_cast %59 : vector<2x128xf32> to vector<1x2x128xf32>
    tpu.vector_store %arg6[%60, %c0_35, %c0_36], %63 {strides = array<i32>} : memref<8x2x128xf32, #tpu.memory_space<vmem>>, vector<1x2x128xf32>,
    %64 = arith.index_cast %c1_i32 : i32 to index
    %c0_37 = arith.constant 0 : index
    %c0_38 = arith.constant 0 : index
    %65 = vector.load %arg7[%64, %c0_37, %c0_38] : memref<8x2x128xf32, #tpu.memory_space<vmem>>, vector<1x2x128xf32>
    %66 = vector.shape_cast %65 : vector<1x2x128xf32> to vector<2x128xf32>
    %67 = vector.shape_cast %45 : vector<2x128xf32> to vector<1x2x128xf32>
    tpu.vector_store %arg7[%64, %c0_37, %c0_38], %67 {strides = array<i32>} : memref<8x2x128xf32, #tpu.memory_space<vmem>>, vector<1x2x128xf32>,
    %68 = vector.extract_strided_slice %45 {offsets = [0, 0], sizes = [2, 32], strides = [1, 1]} : vector<2x128xf32> to vector<2x32xf32>
    %c2_i32 = arith.constant 2 : i32
    %69 = arith.index_cast %c2_i32 : i32 to index
    %c0_39 = arith.constant 0 : index
    %c0_40 = arith.constant 0 : index
    %70 = vector.load %arg0[%69, %c0_39, %c0_40] : memref<8x2x16xf32, #tpu.memory_space<vmem>>, vector<1x2x16xf32>
    %71 = vector.shape_cast %70 : vector<1x2x16xf32> to vector<2x16xf32>
    %c0_41 = arith.constant 0 : index
    %c0_42 = arith.constant 0 : index
    %72 = vector.load %arg8[%c0_41, %c0_42] : memref<2x48xf32, #tpu.memory_space<vmem>>, vector<2x16xf32>
    tpu.vector_store %arg8[%c0_41, %c0_42], %71 {strides = array<i32>} : memref<2x48xf32, #tpu.memory_space<vmem>>, vector<2x16xf32>,
    %c0_43 = arith.constant 0 : index
    %c16_44 = arith.constant 16 : index
    %73 = vector.load %arg8[%c0_43, %c16_44] : memref<2x48xf32, #tpu.memory_space<vmem>>, vector<2x32xf32>
    tpu.vector_store %arg8[%c0_43, %c16_44], %68 {strides = array<i32>} : memref<2x48xf32, #tpu.memory_space<vmem>>, vector<2x32xf32>,
    %c0_45 = arith.constant 0 : index
    %c0_46 = arith.constant 0 : index
    %74 = vector.load %arg8[%c0_45, %c0_46] : memref<2x48xf32, #tpu.memory_space<vmem>>, vector<2x48xf32>
    %cst_47 = arith.constant dense<0.000000e+00> : vector<2x128xf32>
    %75 = tpu.matmul %74, %0, %cst_47 {dimension_numbers = #tpu.dot_dimension_numbers<[1], [0], [0], [1], [0, 0, 1, 1], [], []>} : vector<2x48xf32>, vector<48x128xf32>, vector<2x128xf32> -> vector<2x128xf32>
    %76 = vector.broadcast %1 : vector<1x128xf32> to vector<2x128xf32>
    %77 = arith.addf %75, %76 : vector<2x128xf32>
    %cst_48 = arith.constant dense<0.000000e+00> : vector<2x128xf32>
    %78 = tpu.matmul %77, %2, %cst_48 {dimension_numbers = #tpu.dot_dimension_numbers<[1], [0], [0], [1], [0, 0, 1, 1], [], []>} : vector<2x128xf32>, vector<128x128xf32>, vector<2x128xf32> -> vector<2x128xf32>
    %79 = vector.broadcast %3 : vector<1x128xf32> to vector<2x128xf32>
    %80 = arith.addf %78, %79 : vector<2x128xf32>
    %cst_49 = arith.constant dense<0xFF800000> : vector<2xf32>
    %81 = vector.multi_reduction <maximumf>, %80, %cst_49 [1] : vector<2x128xf32> to vector<2xf32>
    %82 = vector.shape_cast %81 : vector<2xf32> to vector<2x1xf32>
    %83 = vector.broadcast %82 : vector<2x1xf32> to vector<2x128xf32>
    %84 = arith.subf %80, %83 : vector<2x128xf32>
    %85 = math.exp %84 : vector<2x128xf32>
    %cst_50 = arith.constant dense<0.000000e+00> : vector<2xf32>
    %86 = vector.multi_reduction <add>, %85, %cst_50 [1] : vector<2x128xf32> to vector<2xf32>
    %87 = vector.shape_cast %86 : vector<2xf32> to vector<2x1xf32>
    %88 = math.log %87 : vector<2x1xf32>
    %89 = arith.addf %88, %82 : vector<2x1xf32>
    %90 = vector.broadcast %89 : vector<2x1xf32> to vector<2x128xf32>
    %91 = arith.subf %80, %90 : vector<2x128xf32>
    %92 = arith.index_cast %c2_i32 : i32 to index
    %c0_51 = arith.constant 0 : index
    %c0_52 = arith.constant 0 : index
    %93 = vector.load %arg6[%92, %c0_51, %c0_52] : memref<8x2x128xf32, #tpu.memory_space<vmem>>, vector<1x2x128xf32>
    %94 = vector.shape_cast %93 : vector<1x2x128xf32> to vector<2x128xf32>
    %95 = vector.shape_cast %91 : vector<2x128xf32> to vector<1x2x128xf32>
    tpu.vector_store %arg6[%92, %c0_51, %c0_52], %95 {strides = array<i32>} : memref<8x2x128xf32, #tpu.memory_space<vmem>>, vector<1x2x128xf32>,
    %96 = arith.index_cast %c2_i32 : i32 to index
    %c0_53 = arith.constant 0 : index
    %c0_54 = arith.constant 0 : index
    %97 = vector.load %arg7[%96, %c0_53, %c0_54] : memref<8x2x128xf32, #tpu.memory_space<vmem>>, vector<1x2x128xf32>
    %98 = vector.shape_cast %97 : vector<1x2x128xf32> to vector<2x128xf32>
    %99 = vector.shape_cast %77 : vector<2x128xf32> to vector<1x2x128xf32>
    tpu.vector_store %arg7[%96, %c0_53, %c0_54], %99 {strides = array<i32>} : memref<8x2x128xf32, #tpu.memory_space<vmem>>, vector<1x2x128xf32>,
    %100 = vector.extract_strided_slice %77 {offsets = [0, 0], sizes = [2, 32], strides = [1, 1]} : vector<2x128xf32> to vector<2x32xf32>
    %c3_i32 = arith.constant 3 : i32
    %101 = arith.index_cast %c3_i32 : i32 to index
    %c0_55 = arith.constant 0 : index
    %c0_56 = arith.constant 0 : index
    %102 = vector.load %arg0[%101, %c0_55, %c0_56] : memref<8x2x16xf32, #tpu.memory_space<vmem>>, vector<1x2x16xf32>
    %103 = vector.shape_cast %102 : vector<1x2x16xf32> to vector<2x16xf32>
    %c0_57 = arith.constant 0 : index
    %c0_58 = arith.constant 0 : index
    %104 = vector.load %arg8[%c0_57, %c0_58] : memref<2x48xf32, #tpu.memory_space<vmem>>, vector<2x16xf32>
    tpu.vector_store %arg8[%c0_57, %c0_58], %103 {strides = array<i32>} : memref<2x48xf32, #tpu.memory_space<vmem>>, vector<2x16xf32>,
    %c0_59 = arith.constant 0 : index
    %c16_60 = arith.constant 16 : index
    %105 = vector.load %arg8[%c0_59, %c16_60] : memref<2x48xf32, #tpu.memory_space<vmem>>, vector<2x32xf32>
    tpu.vector_store %arg8[%c0_59, %c16_60], %100 {strides = array<i32>} : memref<2x48xf32, #tpu.memory_space<vmem>>, vector<2x32xf32>,
    %c0_61 = arith.constant 0 : index
    %c0_62 = arith.constant 0 : index
    %106 = vector.load %arg8[%c0_61, %c0_62] : memref<2x48xf32, #tpu.memory_space<vmem>>, vector<2x48xf32>
    %cst_63 = arith.constant dense<0.000000e+00> : vector<2x128xf32>
    %107 = tpu.matmul %106, %0, %cst_63 {dimension_numbers = #tpu.dot_dimension_numbers<[1], [0], [0], [1], [0, 0, 1, 1], [], []>} : vector<2x48xf32>, vector<48x128xf32>, vector<2x128xf32> -> vector<2x128xf32>
    %108 = vector.broadcast %1 : vector<1x128xf32> to vector<2x128xf32>
    %109 = arith.addf %107, %108 : vector<2x128xf32>
    %cst_64 = arith.constant dense<0.000000e+00> : vector<2x128xf32>
    %110 = tpu.matmul %109, %2, %cst_64 {dimension_numbers = #tpu.dot_dimension_numbers<[1], [0], [0], [1], [0, 0, 1, 1], [], []>} : vector<2x128xf32>, vector<128x128xf32>, vector<2x128xf32> -> vector<2x128xf32>
    %111 = vector.broadcast %3 : vector<1x128xf32> to vector<2x128xf32>
    %112 = arith.addf %110, %111 : vector<2x128xf32>
    %cst_65 = arith.constant dense<0xFF800000> : vector<2xf32>
    %113 = vector.multi_reduction <maximumf>, %112, %cst_65 [1] : vector<2x128xf32> to vector<2xf32>
    %114 = vector.shape_cast %113 : vector<2xf32> to vector<2x1xf32>
    %115 = vector.broadcast %114 : vector<2x1xf32> to vector<2x128xf32>
    %116 = arith.subf %112, %115 : vector<2x128xf32>
    %117 = math.exp %116 : vector<2x128xf32>
    %cst_66 = arith.constant dense<0.000000e+00> : vector<2xf32>
    %118 = vector.multi_reduction <add>, %117, %cst_66 [1] : vector<2x128xf32> to vector<2xf32>
    %119 = vector.shape_cast %118 : vector<2xf32> to vector<2x1xf32>
    %120 = math.log %119 : vector<2x1xf32>
    %121 = arith.addf %120, %114 : vector<2x1xf32>
    %122 = vector.broadcast %121 : vector<2x1xf32> to vector<2x128xf32>
    %123 = arith.subf %112, %122 : vector<2x128xf32>
    %124 = arith.index_cast %c3_i32 : i32 to index
    %c0_67 = arith.constant 0 : index
    %c0_68 = arith.constant 0 : index
    %125 = vector.load %arg6[%124, %c0_67, %c0_68] : memref<8x2x128xf32, #tpu.memory_space<vmem>>, vector<1x2x128xf32>
    %126 = vector.shape_cast %125 : vector<1x2x128xf32> to vector<2x128xf32>
    %127 = vector.shape_cast %123 : vector<2x128xf32> to vector<1x2x128xf32>
    tpu.vector_store %arg6[%124, %c0_67, %c0_68], %127 {strides = array<i32>} : memref<8x2x128xf32, #tpu.memory_space<vmem>>, vector<1x2x128xf32>,
    %128 = arith.index_cast %c3_i32 : i32 to index
    %c0_69 = arith.constant 0 : index
    %c0_70 = arith.constant 0 : index
    %129 = vector.load %arg7[%128, %c0_69, %c0_70] : memref<8x2x128xf32, #tpu.memory_space<vmem>>, vector<1x2x128xf32>
    %130 = vector.shape_cast %129 : vector<1x2x128xf32> to vector<2x128xf32>
    %131 = vector.shape_cast %109 : vector<2x128xf32> to vector<1x2x128xf32>
    tpu.vector_store %arg7[%128, %c0_69, %c0_70], %131 {strides = array<i32>} : memref<8x2x128xf32, #tpu.memory_space<vmem>>, vector<1x2x128xf32>,
    %132 = vector.extract_strided_slice %109 {offsets = [0, 0], sizes = [2, 32], strides = [1, 1]} : vector<2x128xf32> to vector<2x32xf32>
    %c4_i32 = arith.constant 4 : i32
    %133 = arith.index_cast %c4_i32 : i32 to index
    %c0_71 = arith.constant 0 : index
    %c0_72 = arith.constant 0 : index
    %134 = vector.load %arg0[%133, %c0_71, %c0_72] : memref<8x2x16xf32, #tpu.memory_space<vmem>>, vector<1x2x16xf32>
    %135 = vector.shape_cast %134 : vector<1x2x16xf32> to vector<2x16xf32>
    %c0_73 = arith.constant 0 : index
    %c0_74 = arith.constant 0 : index
    %136 = vector.load %arg8[%c0_73, %c0_74] : memref<2x48xf32, #tpu.memory_space<vmem>>, vector<2x16xf32>
    tpu.vector_store %arg8[%c0_73, %c0_74], %135 {strides = array<i32>} : memref<2x48xf32, #tpu.memory_space<vmem>>, vector<2x16xf32>,
    %c0_75 = arith.constant 0 : index
    %c16_76 = arith.constant 16 : index
    %137 = vector.load %arg8[%c0_75, %c16_76] : memref<2x48xf32, #tpu.memory_space<vmem>>, vector<2x32xf32>
    tpu.vector_store %arg8[%c0_75, %c16_76], %132 {strides = array<i32>} : memref<2x48xf32, #tpu.memory_space<vmem>>, vector<2x32xf32>,
    %c0_77 = arith.constant 0 : index
    %c0_78 = arith.constant 0 : index
    %138 = vector.load %arg8[%c0_77, %c0_78] : memref<2x48xf32, #tpu.memory_space<vmem>>, vector<2x48xf32>
    %cst_79 = arith.constant dense<0.000000e+00> : vector<2x128xf32>
    %139 = tpu.matmul %138, %0, %cst_79 {dimension_numbers = #tpu.dot_dimension_numbers<[1], [0], [0], [1], [0, 0, 1, 1], [], []>} : vector<2x48xf32>, vector<48x128xf32>, vector<2x128xf32> -> vector<2x128xf32>
    %140 = vector.broadcast %1 : vector<1x128xf32> to vector<2x128xf32>
    %141 = arith.addf %139, %140 : vector<2x128xf32>
    %cst_80 = arith.constant dense<0.000000e+00> : vector<2x128xf32>
    %142 = tpu.matmul %141, %2, %cst_80 {dimension_numbers = #tpu.dot_dimension_numbers<[1], [0], [0], [1], [0, 0, 1, 1], [], []>} : vector<2x128xf32>, vector<128x128xf32>, vector<2x128xf32> -> vector<2x128xf32>
    %143 = vector.broadcast %3 : vector<1x128xf32> to vector<2x128xf32>
    %144 = arith.addf %142, %143 : vector<2x128xf32>
    %cst_81 = arith.constant dense<0xFF800000> : vector<2xf32>
    %145 = vector.multi_reduction <maximumf>, %144, %cst_81 [1] : vector<2x128xf32> to vector<2xf32>
    %146 = vector.shape_cast %145 : vector<2xf32> to vector<2x1xf32>
    %147 = vector.broadcast %146 : vector<2x1xf32> to vector<2x128xf32>
    %148 = arith.subf %144, %147 : vector<2x128xf32>
    %149 = math.exp %148 : vector<2x128xf32>
    %cst_82 = arith.constant dense<0.000000e+00> : vector<2xf32>
    %150 = vector.multi_reduction <add>, %149, %cst_82 [1] : vector<2x128xf32> to vector<2xf32>
    %151 = vector.shape_cast %150 : vector<2xf32> to vector<2x1xf32>
    %152 = math.log %151 : vector<2x1xf32>
    %153 = arith.addf %152, %146 : vector<2x1xf32>
    %154 = vector.broadcast %153 : vector<2x1xf32> to vector<2x128xf32>
    %155 = arith.subf %144, %154 : vector<2x128xf32>
    %156 = arith.index_cast %c4_i32 : i32 to index
    %c0_83 = arith.constant 0 : index
    %c0_84 = arith.constant 0 : index
    %157 = vector.load %arg6[%156, %c0_83, %c0_84] : memref<8x2x128xf32, #tpu.memory_space<vmem>>, vector<1x2x128xf32>
    %158 = vector.shape_cast %157 : vector<1x2x128xf32> to vector<2x128xf32>
    %159 = vector.shape_cast %155 : vector<2x128xf32> to vector<1x2x128xf32>
    tpu.vector_store %arg6[%156, %c0_83, %c0_84], %159 {strides = array<i32>} : memref<8x2x128xf32, #tpu.memory_space<vmem>>, vector<1x2x128xf32>,
    %160 = arith.index_cast %c4_i32 : i32 to index
    %c0_85 = arith.constant 0 : index
    %c0_86 = arith.constant 0 : index
    %161 = vector.load %arg7[%160, %c0_85, %c0_86] : memref<8x2x128xf32, #tpu.memory_space<vmem>>, vector<1x2x128xf32>
    %162 = vector.shape_cast %161 : vector<1x2x128xf32> to vector<2x128xf32>
    %163 = vector.shape_cast %141 : vector<2x128xf32> to vector<1x2x128xf32>
    tpu.vector_store %arg7[%160, %c0_85, %c0_86], %163 {strides = array<i32>} : memref<8x2x128xf32, #tpu.memory_space<vmem>>, vector<1x2x128xf32>,
    %164 = vector.extract_strided_slice %141 {offsets = [0, 0], sizes = [2, 32], strides = [1, 1]} : vector<2x128xf32> to vector<2x32xf32>
    %c5_i32 = arith.constant 5 : i32
    %165 = arith.index_cast %c5_i32 : i32 to index
    %c0_87 = arith.constant 0 : index
    %c0_88 = arith.constant 0 : index
    %166 = vector.load %arg0[%165, %c0_87, %c0_88] : memref<8x2x16xf32, #tpu.memory_space<vmem>>, vector<1x2x16xf32>
    %167 = vector.shape_cast %166 : vector<1x2x16xf32> to vector<2x16xf32>
    %c0_89 = arith.constant 0 : index
    %c0_90 = arith.constant 0 : index
    %168 = vector.load %arg8[%c0_89, %c0_90] : memref<2x48xf32, #tpu.memory_space<vmem>>, vector<2x16xf32>
    tpu.vector_store %arg8[%c0_89, %c0_90], %167 {strides = array<i32>} : memref<2x48xf32, #tpu.memory_space<vmem>>, vector<2x16xf32>,
    %c0_91 = arith.constant 0 : index
    %c16_92 = arith.constant 16 : index
    %169 = vector.load %arg8[%c0_91, %c16_92] : memref<2x48xf32, #tpu.memory_space<vmem>>, vector<2x32xf32>
    tpu.vector_store %arg8[%c0_91, %c16_92], %164 {strides = array<i32>} : memref<2x48xf32, #tpu.memory_space<vmem>>, vector<2x32xf32>,
    %c0_93 = arith.constant 0 : index
    %c0_94 = arith.constant 0 : index
    %170 = vector.load %arg8[%c0_93, %c0_94] : memref<2x48xf32, #tpu.memory_space<vmem>>, vector<2x48xf32>
    %cst_95 = arith.constant dense<0.000000e+00> : vector<2x128xf32>
    %171 = tpu.matmul %170, %0, %cst_95 {dimension_numbers = #tpu.dot_dimension_numbers<[1], [0], [0], [1], [0, 0, 1, 1], [], []>} : vector<2x48xf32>, vector<48x128xf32>, vector<2x128xf32> -> vector<2x128xf32>
    %172 = vector.broadcast %1 : vector<1x128xf32> to vector<2x128xf32>
    %173 = arith.addf %171, %172 : vector<2x128xf32>
    %cst_96 = arith.constant dense<0.000000e+00> : vector<2x128xf32>
    %174 = tpu.matmul %173, %2, %cst_96 {dimension_numbers = #tpu.dot_dimension_numbers<[1], [0], [0], [1], [0, 0, 1, 1], [], []>} : vector<2x128xf32>, vector<128x128xf32>, vector<2x128xf32> -> vector<2x128xf32>
    %175 = vector.broadcast %3 : vector<1x128xf32> to vector<2x128xf32>
    %176 = arith.addf %174, %175 : vector<2x128xf32>
    %cst_97 = arith.constant dense<0xFF800000> : vector<2xf32>
    %177 = vector.multi_reduction <maximumf>, %176, %cst_97 [1] : vector<2x128xf32> to vector<2xf32>
    %178 = vector.shape_cast %177 : vector<2xf32> to vector<2x1xf32>
    %179 = vector.broadcast %178 : vector<2x1xf32> to vector<2x128xf32>
    %180 = arith.subf %176, %179 : vector<2x128xf32>
    %181 = math.exp %180 : vector<2x128xf32>
    %cst_98 = arith.constant dense<0.000000e+00> : vector<2xf32>
    %182 = vector.multi_reduction <add>, %181, %cst_98 [1] : vector<2x128xf32> to vector<2xf32>
    %183 = vector.shape_cast %182 : vector<2xf32> to vector<2x1xf32>
    %184 = math.log %183 : vector<2x1xf32>
    %185 = arith.addf %184, %178 : vector<2x1xf32>
    %186 = vector.broadcast %185 : vector<2x1xf32> to vector<2x128xf32>
    %187 = arith.subf %176, %186 : vector<2x128xf32>
    %188 = arith.index_cast %c5_i32 : i32 to index
    %c0_99 = arith.constant 0 : index
    %c0_100 = arith.constant 0 : index
    %189 = vector.load %arg6[%188, %c0_99, %c0_100] : memref<8x2x128xf32, #tpu.memory_space<vmem>>, vector<1x2x128xf32>
    %190 = vector.shape_cast %189 : vector<1x2x128xf32> to vector<2x128xf32>
    %191 = vector.shape_cast %187 : vector<2x128xf32> to vector<1x2x128xf32>
    tpu.vector_store %arg6[%188, %c0_99, %c0_100], %191 {strides = array<i32>} : memref<8x2x128xf32, #tpu.memory_space<vmem>>, vector<1x2x128xf32>,
    %192 = arith.index_cast %c5_i32 : i32 to index
    %c0_101 = arith.constant 0 : index
    %c0_102 = arith.constant 0 : index
    %193 = vector.load %arg7[%192, %c0_101, %c0_102] : memref<8x2x128xf32, #tpu.memory_space<vmem>>, vector<1x2x128xf32>
    %194 = vector.shape_cast %193 : vector<1x2x128xf32> to vector<2x128xf32>
    %195 = vector.shape_cast %173 : vector<2x128xf32> to vector<1x2x128xf32>
    tpu.vector_store %arg7[%192, %c0_101, %c0_102], %195 {strides = array<i32>} : memref<8x2x128xf32, #tpu.memory_space<vmem>>, vector<1x2x128xf32>,
    %196 = vector.extract_strided_slice %173 {offsets = [0, 0], sizes = [2, 32], strides = [1, 1]} : vector<2x128xf32> to vector<2x32xf32>
    %c6_i32 = arith.constant 6 : i32
    %197 = arith.index_cast %c6_i32 : i32 to index
    %c0_103 = arith.constant 0 : index
    %c0_104 = arith.constant 0 : index
    %198 = vector.load %arg0[%197, %c0_103, %c0_104] : memref<8x2x16xf32, #tpu.memory_space<vmem>>, vector<1x2x16xf32>
    %199 = vector.shape_cast %198 : vector<1x2x16xf32> to vector<2x16xf32>
    %c0_105 = arith.constant 0 : index
    %c0_106 = arith.constant 0 : index
    %200 = vector.load %arg8[%c0_105, %c0_106] : memref<2x48xf32, #tpu.memory_space<vmem>>, vector<2x16xf32>
    tpu.vector_store %arg8[%c0_105, %c0_106], %199 {strides = array<i32>} : memref<2x48xf32, #tpu.memory_space<vmem>>, vector<2x16xf32>,
    %c0_107 = arith.constant 0 : index
    %c16_108 = arith.constant 16 : index
    %201 = vector.load %arg8[%c0_107, %c16_108] : memref<2x48xf32, #tpu.memory_space<vmem>>, vector<2x32xf32>
    tpu.vector_store %arg8[%c0_107, %c16_108], %196 {strides = array<i32>} : memref<2x48xf32, #tpu.memory_space<vmem>>, vector<2x32xf32>,
    %c0_109 = arith.constant 0 : index
    %c0_110 = arith.constant 0 : index
    %202 = vector.load %arg8[%c0_109, %c0_110] : memref<2x48xf32, #tpu.memory_space<vmem>>, vector<2x48xf32>
    %cst_111 = arith.constant dense<0.000000e+00> : vector<2x128xf32>
    %203 = tpu.matmul %202, %0, %cst_111 {dimension_numbers = #tpu.dot_dimension_numbers<[1], [0], [0], [1], [0, 0, 1, 1], [], []>} : vector<2x48xf32>, vector<48x128xf32>, vector<2x128xf32> -> vector<2x128xf32>
    %204 = vector.broadcast %1 : vector<1x128xf32> to vector<2x128xf32>
    %205 = arith.addf %203, %204 : vector<2x128xf32>
    %cst_112 = arith.constant dense<0.000000e+00> : vector<2x128xf32>
    %206 = tpu.matmul %205, %2, %cst_112 {dimension_numbers = #tpu.dot_dimension_numbers<[1], [0], [0], [1], [0, 0, 1, 1], [], []>} : vector<2x128xf32>, vector<128x128xf32>, vector<2x128xf32> -> vector<2x128xf32>
    %207 = vector.broadcast %3 : vector<1x128xf32> to vector<2x128xf32>
    %208 = arith.addf %206, %207 : vector<2x128xf32>
    %cst_113 = arith.constant dense<0xFF800000> : vector<2xf32>
    %209 = vector.multi_reduction <maximumf>, %208, %cst_113 [1] : vector<2x128xf32> to vector<2xf32>
    %210 = vector.shape_cast %209 : vector<2xf32> to vector<2x1xf32>
    %211 = vector.broadcast %210 : vector<2x1xf32> to vector<2x128xf32>
    %212 = arith.subf %208, %211 : vector<2x128xf32>
    %213 = math.exp %212 : vector<2x128xf32>
    %cst_114 = arith.constant dense<0.000000e+00> : vector<2xf32>
    %214 = vector.multi_reduction <add>, %213, %cst_114 [1] : vector<2x128xf32> to vector<2xf32>
    %215 = vector.shape_cast %214 : vector<2xf32> to vector<2x1xf32>
    %216 = math.log %215 : vector<2x1xf32>
    %217 = arith.addf %216, %210 : vector<2x1xf32>
    %218 = vector.broadcast %217 : vector<2x1xf32> to vector<2x128xf32>
    %219 = arith.subf %208, %218 : vector<2x128xf32>
    %220 = arith.index_cast %c6_i32 : i32 to index
    %c0_115 = arith.constant 0 : index
    %c0_116 = arith.constant 0 : index
    %221 = vector.load %arg6[%220, %c0_115, %c0_116] : memref<8x2x128xf32, #tpu.memory_space<vmem>>, vector<1x2x128xf32>
    %222 = vector.shape_cast %221 : vector<1x2x128xf32> to vector<2x128xf32>
    %223 = vector.shape_cast %219 : vector<2x128xf32> to vector<1x2x128xf32>
    tpu.vector_store %arg6[%220, %c0_115, %c0_116], %223 {strides = array<i32>} : memref<8x2x128xf32, #tpu.memory_space<vmem>>, vector<1x2x128xf32>,
    %224 = arith.index_cast %c6_i32 : i32 to index
    %c0_117 = arith.constant 0 : index
    %c0_118 = arith.constant 0 : index
    %225 = vector.load %arg7[%224, %c0_117, %c0_118] : memref<8x2x128xf32, #tpu.memory_space<vmem>>, vector<1x2x128xf32>
    %226 = vector.shape_cast %225 : vector<1x2x128xf32> to vector<2x128xf32>
    %227 = vector.shape_cast %205 : vector<2x128xf32> to vector<1x2x128xf32>
    tpu.vector_store %arg7[%224, %c0_117, %c0_118], %227 {strides = array<i32>} : memref<8x2x128xf32, #tpu.memory_space<vmem>>, vector<1x2x128xf32>,
    %228 = vector.extract_strided_slice %205 {offsets = [0, 0], sizes = [2, 32], strides = [1, 1]} : vector<2x128xf32> to vector<2x32xf32>
    %c7_i32 = arith.constant 7 : i32
    %229 = arith.index_cast %c7_i32 : i32 to index
    %c0_119 = arith.constant 0 : index
    %c0_120 = arith.constant 0 : index
    %230 = vector.load %arg0[%229, %c0_119, %c0_120] : memref<8x2x16xf32, #tpu.memory_space<vmem>>, vector<1x2x16xf32>
    %231 = vector.shape_cast %230 : vector<1x2x16xf32> to vector<2x16xf32>
    %c0_121 = arith.constant 0 : index
    %c0_122 = arith.constant 0 : index
    %232 = vector.load %arg8[%c0_121, %c0_122] : memref<2x48xf32, #tpu.memory_space<vmem>>, vector<2x16xf32>
    tpu.vector_store %arg8[%c0_121, %c0_122], %231 {strides = array<i32>} : memref<2x48xf32, #tpu.memory_space<vmem>>, vector<2x16xf32>,
    %c0_123 = arith.constant 0 : index
    %c16_124 = arith.constant 16 : index
    %233 = vector.load %arg8[%c0_123, %c16_124] : memref<2x48xf32, #tpu.memory_space<vmem>>, vector<2x32xf32>
    tpu.vector_store %arg8[%c0_123, %c16_124], %228 {strides = array<i32>} : memref<2x48xf32, #tpu.memory_space<vmem>>, vector<2x32xf32>,
    %c0_125 = arith.constant 0 : index
    %c0_126 = arith.constant 0 : index
    %234 = vector.load %arg8[%c0_125, %c0_126] : memref<2x48xf32, #tpu.memory_space<vmem>>, vector<2x48xf32>
    %cst_127 = arith.constant dense<0.000000e+00> : vector<2x128xf32>
    %235 = tpu.matmul %234, %0, %cst_127 {dimension_numbers = #tpu.dot_dimension_numbers<[1], [0], [0], [1], [0, 0, 1, 1], [], []>} : vector<2x48xf32>, vector<48x128xf32>, vector<2x128xf32> -> vector<2x128xf32>
    %236 = vector.broadcast %1 : vector<1x128xf32> to vector<2x128xf32>
    %237 = arith.addf %235, %236 : vector<2x128xf32>
    %cst_128 = arith.constant dense<0.000000e+00> : vector<2x128xf32>
    %238 = tpu.matmul %237, %2, %cst_128 {dimension_numbers = #tpu.dot_dimension_numbers<[1], [0], [0], [1], [0, 0, 1, 1], [], []>} : vector<2x128xf32>, vector<128x128xf32>, vector<2x128xf32> -> vector<2x128xf32>
    %239 = vector.broadcast %3 : vector<1x128xf32> to vector<2x128xf32>
    %240 = arith.addf %238, %239 : vector<2x128xf32>
    %cst_129 = arith.constant dense<0xFF800000> : vector<2xf32>
    %241 = vector.multi_reduction <maximumf>, %240, %cst_129 [1] : vector<2x128xf32> to vector<2xf32>
    %242 = vector.shape_cast %241 : vector<2xf32> to vector<2x1xf32>
    %243 = vector.broadcast %242 : vector<2x1xf32> to vector<2x128xf32>
    %244 = arith.subf %240, %243 : vector<2x128xf32>
    %245 = math.exp %244 : vector<2x128xf32>
    %cst_130 = arith.constant dense<0.000000e+00> : vector<2xf32>
    %246 = vector.multi_reduction <add>, %245, %cst_130 [1] : vector<2x128xf32> to vector<2xf32>
    %247 = vector.shape_cast %246 : vector<2xf32> to vector<2x1xf32>
    %248 = math.log %247 : vector<2x1xf32>
    %249 = arith.addf %248, %242 : vector<2x1xf32>
    %250 = vector.broadcast %249 : vector<2x1xf32> to vector<2x128xf32>
    %251 = arith.subf %240, %250 : vector<2x128xf32>
    %252 = arith.index_cast %c7_i32 : i32 to index
    %c0_131 = arith.constant 0 : index
    %c0_132 = arith.constant 0 : index
    %253 = vector.load %arg6[%252, %c0_131, %c0_132] : memref<8x2x128xf32, #tpu.memory_space<vmem>>, vector<1x2x128xf32>
    %254 = vector.shape_cast %253 : vector<1x2x128xf32> to vector<2x128xf32>
    %255 = vector.shape_cast %251 : vector<2x128xf32> to vector<1x2x128xf32>
    tpu.vector_store %arg6[%252, %c0_131, %c0_132], %255 {strides = array<i32>} : memref<8x2x128xf32, #tpu.memory_space<vmem>>, vector<1x2x128xf32>,
    %256 = arith.index_cast %c7_i32 : i32 to index
    %c0_133 = arith.constant 0 : index
    %c0_134 = arith.constant 0 : index
    %257 = vector.load %arg7[%256, %c0_133, %c0_134] : memref<8x2x128xf32, #tpu.memory_space<vmem>>, vector<1x2x128xf32>
    %258 = vector.shape_cast %257 : vector<1x2x128xf32> to vector<2x128xf32>
    %259 = vector.shape_cast %237 : vector<2x128xf32> to vector<1x2x128xf32>
    tpu.vector_store %arg7[%256, %c0_133, %c0_134], %259 {strides = array<i32>} : memref<8x2x128xf32, #tpu.memory_space<vmem>>, vector<1x2x128xf32>,
    %260 = vector.extract_strided_slice %237 {offsets = [0, 0], sizes = [2, 32], strides = [1, 1]} : vector<2x128xf32> to vector<2x32xf32>
    %c8_i32 = arith.constant 8 : i32
    return
  }
}

</mosaic_0001>

<llo_original>
// kernel: tpu_custom_call.1
$region0: #{tpu_custom_call.1}
  #allocation0 [shape = 'u32[]', space=smem, size = 0x4, offset = 0x4, fixed_abs, tag = 'smem constant byte address 0x4 - core index']
  #allocation1 [shape = 'u32[144,128]{1,0:T(1,128)}', space=vmem, size = 0x12000, scoped, tag = 'internal scratch']
  #allocation2 [shape = 'f32[2,48]{1,0:T(2,128)}', space=vmem, size = 0x400, scoped, tag = 'scratch operand']
  %s0 = inlined_call_operand.hbm [shape: f32[8,2,16], index: 0, kind: input, shape index: {}]
  %s1 = inlined_call_operand.hbm [shape: f32[2,32], index: 1, kind: input, shape index: {}]
  %s2 = inlined_call_operand.hbm [shape: f32[48,128], index: 2, kind: input, shape index: {}]
  %s3 = inlined_call_operand.vmem [shape: f32[1,128], index: 3, kind: input, shape index: {}]
  %s4 = inlined_call_operand.hbm [shape: f32[128,128], index: 4, kind: input, shape index: {}]
  %s5 = inlined_call_operand.vmem [shape: f32[1,128], index: 5, kind: input, shape index: {}]
  %s6 = inlined_call_operand.hbm [shape: f32[8,2,128], index: 6, kind: output, shape index: {0}]
  %s7 = inlined_call_operand.hbm [shape: f32[8,2,128], index: 7, kind: output, shape index: {1}]
  %8 = xla_tuple %s6, %s7
  %s9 = sld [smem:[#allocation0]]
  $region58: #{tpu_custom_call.1} parent=0
    _
  %s11 = ssub.s32 1, %s9
  %s12 = scalar_select 0, %s11, %s9
  $region1: #{tpu_custom_call.1} parent=0
    #allocation3 [shape = 'u8[8192]{0}', space=vmem, size = 0x2000, scoped, tag = 'input window, operand 0, single buffered']
    #allocation4 [shape = 's32[1]{0}', space=sflag, size = 0x4, scoped, tag = 'scoped memory for tpu_custom_call.1']
    #allocation5 [shape = 's32[1]{0}', space=sflag, size = 0x4, scoped, tag = 'scoped memory for tpu_custom_call.1']
    #allocation6 [shape = 'u8[1024]{0}', space=vmem, size = 0x400, scoped, tag = 'input window, operand 1, single buffered']
    #allocation7 [shape = 's32[1]{0}', space=sflag, size = 0x4, scoped, tag = 'scoped memory for tpu_custom_call.1']
    #allocation8 [shape = 'u8[24576]{0}', space=vmem, size = 0x6000, scoped, tag = 'input window, operand 2, single buffered']
    #allocation9 [shape = 'u8[65536]{0}', space=vmem, size = 0x10000, scoped, tag = 'input window, operand 4, single buffered']
    #allocation10 [shape = 's32[1]{0}', space=sflag, size = 0x4, scoped, tag = 'scoped memory for tpu_custom_call.1']
    #allocation11 [shape = 'u8[8192]{0}', space=vmem, size = 0x2000, scoped, tag = 'output window, operand 0, single buffered']
    #allocation12 [shape = 'u8[8192]{0}', space=vmem, size = 0x2000, scoped, tag = 'output window, operand 1, single buffered']
    #allocation13 [shape = 's32[1]{0}', space=sflag, size = 0x4, scoped, tag = 'scoped memory for tpu_custom_call.1']
    %13 = vsyncpa [#allocation4], 0
    %14 = vsyncpa [#allocation7], 0
    %15 = vsyncpa [#allocation10], 0
    %16 = vsyncpa [#allocation5], 0
    %17 = vsyncpa [#allocation13], 0
    // Predicated region
    $region2: #{tpu_custom_call.1} parent=1 // pred_check
      _
    $region3: #{tpu_custom_call.1} parent=1 // pred_check_branch
      %19 = sbr.rel (0) target = $region5
    $region4: #{tpu_custom_call.1} parent=1 // pred_region
      %s21 = ssub.s32 256, 256
      %22 = vsyncadd [#allocation4], %s21
      %s23 = sshll.u32 [#allocation3], 4
      %s24 = int_to_ptr.vmem [resolvable:$true] %s23
      %29 = dma.hbm_to_vmem [thread:$0]  %s0, 256, %s24, [#allocation4], 32, 32, 2
    $region5: #{tpu_custom_call.1} parent=1 // pred_fallthru
      _
    // Predicated region
    $region6: #{tpu_custom_call.1} parent=1 // pred_check
      _
    $region7: #{tpu_custom_call.1} parent=1 // pred_check_branch
      %31 = sbr.rel (0) target = $region9
    $region8: #{tpu_custom_call.1} parent=1 // pred_region
      %s33 = ssub.s32 32, 32
      %34 = vsyncadd [#allocation7], %s33
      %s36 = sshll.u32 [#allocation6], 4
      %s37 = int_to_ptr.vmem [resolvable:$true] %s36
      %39 = dma.hbm_to_vmem [thread:$0]  %s1, 32, %s37, [#allocation7]
    $region9: #{tpu_custom_call.1} parent=1 // pred_fallthru
      _
    // Predicated region
    $region10: #{tpu_custom_call.1} parent=1 // pred_check
      _
    $region11: #{tpu_custom_call.1} parent=1 // pred_check_branch
      %41 = sbr.rel (0) target = $region13
    $region12: #{tpu_custom_call.1} parent=1 // pred_region
      %s43 = ssub.s32 768, 768
      %44 = vsyncadd [#allocation7], %s43
      %s45 = sshll.u32 [#allocation8], 4
      %s46 = int_to_ptr.vmem [resolvable:$true] %s45
      %51 = dma.hbm_to_vmem [thread:$0]  %s2, 768, %s46, [#allocation7], 128, 128, 8
    $region13: #{tpu_custom_call.1} parent=1 // pred_fallthru
      _
    // Predicated region
    $region14: #{tpu_custom_call.1} parent=1 // pred_check
      _
    $region15: #{tpu_custom_call.1} parent=1 // pred_check_branch
      %53 = sbr.rel (0) target = $region17
    $region16: #{tpu_custom_call.1} parent=1 // pred_region
      _
    $region17: #{tpu_custom_call.1} parent=1 // pred_fallthru
      _
    // Predicated region
    $region18: #{tpu_custom_call.1} parent=1 // pred_check
      _
    $region19: #{tpu_custom_call.1} parent=1 // pred_check_branch
      %55 = sbr.rel (0) target = $region21
    $region20: #{tpu_custom_call.1} parent=1 // pred_region
      %s57 = ssub.s32 2048, 2048
      %58 = vsyncadd [#allocation10], %s57
      %s59 = sshll.u32 [#allocation9], 4
      %s60 = int_to_ptr.vmem [resolvable:$true] %s59
      %65 = dma.hbm_to_vmem [thread:$0]  %s4, 2048, %s60, [#allocation10], 128, 128, 8
    $region21: #{tpu_custom_call.1} parent=1 // pred_fallthru
      _
    // Predicated region
    $region22: #{tpu_custom_call.1} parent=1 // pred_check
      _
    $region23: #{tpu_custom_call.1} parent=1 // pred_check_branch
      %67 = sbr.rel (0) target = $region25
    $region24: #{tpu_custom_call.1} parent=1 // pred_region
      _
    $region25: #{tpu_custom_call.1} parent=1 // pred_fallthru
      _
    // Predicated region
    $region26: #{tpu_custom_call.1} parent=1 // pred_check
      _
    $region27: #{tpu_custom_call.1} parent=1 // pred_check_branch
      %69 = sbr.rel (0) target = $region29
    $region28: #{tpu_custom_call.1} parent=1 // pred_region
      %70 = dma.done [#allocation4], 256
    $region29: #{tpu_custom_call.1} parent=1 // pred_fallthru
      _
    // Predicated region
    $region30: #{tpu_custom_call.1} parent=1 // pred_check
      _
    $region31: #{tpu_custom_call.1} parent=1 // pred_check_branch
      %72 = sbr.rel (0) target = $region33
    $region32: #{tpu_custom_call.1} parent=1 // pred_region
      %73 = dma.done [#allocation7], 32
    $region33: #{tpu_custom_call.1} parent=1 // pred_fallthru
      _
    // Predicated region
    $region34: #{tpu_custom_call.1} parent=1 // pred_check
      _
    $region35: #{tpu_custom_call.1} parent=1 // pred_check_branch
      %75 = sbr.rel (0) target = $region37
    $region36: #{tpu_custom_call.1} parent=1 // pred_region
      %76 = dma.done [#allocation7], 768
    $region37: #{tpu_custom_call.1} parent=1 // pred_fallthru
      _
    // Predicated region
    $region38: #{tpu_custom_call.1} parent=1 // pred_check
      _
    $region39: #{tpu_custom_call.1} parent=1 // pred_check_branch
      %78 = sbr.rel (0) target = $region41
    $region40: #{tpu_custom_call.1} parent=1 // pred_region
      %79 = dma.done [#allocation10], 2048
    $region41: #{tpu_custom_call.1} parent=1 // pred_fallthru
      _
    %v80 = vld [vmem:[#allocation8] sm:$0xff]
    %v81 = vld [vmem:[#allocation8 + $0x8] sm:$0xff]
    %v82 = vld [vmem:[#allocation8 + $0x10] sm:$0xff]
    %v83 = vld [vmem:[#allocation8 + $0x18] sm:$0xff]
    %v84 = vld [vmem:[#allocation8 + $0x20] sm:$0xff]
    %v85 = vld [vmem:[#allocation8 + $0x28] sm:$0xff]
    %v86 = vld [vmem:[%s3] sm:$0x1]
    %v87 = vld [vmem:[#allocation9] sm:$0xff]
    %v88 = vld [vmem:[#allocation9 + $0x8] sm:$0xff]
    %v89 = vld [vmem:[#allocation9 + $0x10] sm:$0xff]
    %v90 = vld [vmem:[#allocation9 + $0x18] sm:$0xff]
    %v91 = vld [vmem:[#allocation9 + $0x20] sm:$0xff]
    %v92 = vld [vmem:[#allocation9 + $0x28] sm:$0xff]
    %v93 = vld [vmem:[#allocation9 + $0x30] sm:$0xff]
    %v94 = vld [vmem:[#allocation9 + $0x38] sm:$0xff]
    %v95 = vld [vmem:[#allocation9 + $0x40] sm:$0xff]
    %v96 = vld [vmem:[#allocation9 + $0x48] sm:$0xff]
    %v97 = vld [vmem:[#allocation9 + $0x50] sm:$0xff]
    %v98 = vld [vmem:[#allocation9 + $0x58] sm:$0xff]
    %v99 = vld [vmem:[#allocation9 + $0x60] sm:$0xff]
    %v100 = vld [vmem:[#allocation9 + $0x68] sm:$0xff]
    %v101 = vld [vmem:[#allocation9 + $0x70] sm:$0xff]
    %v102 = vld [vmem:[#allocation9 + $0x78] sm:$0xff]
    %v103 = vld [vmem:[%s5] sm:$0x1]
    %v104 = vld [vmem:[#allocation6] sm:$0x3]
    %v105 = vld [vmem:[#allocation3] sm:$0x3]
    %vm106 = vcmask 123904
    %107 = vst.msk [vmem:[#allocation2] sm:$0x3] %vm106, %v105
    %109 = vrot.lane.b32.xlu0 %v104, 16
    %v110 = vpop.permute.xlu0 %109
    %vm112 = vcmask 386176
    %113 = vst.msk [vmem:[#allocation2] sm:$0x3] %vm112, %v110
    %v114 = vld [vmem:[#allocation2] sm:$0x3]
    %v116 = vlaneseq
    %v117 = vshrl.u32 %v116, 7
    %v118 = vsub.s32 0, %v117
    %v119 = vrot.slane %v86, %v118
    %vm121 = vcmask 392192
    %v123 = vsel %vm121, %v114, 0
    %125 = vmatprep.subr.mxu0 0.0
    %126 = vmatpush1.msra.mxu0 0.0
    %127 = vmatprep.subr.mxu0 0.0
    %128 = vmatpush1.msra.mxu0 0.0
    %129 = vmatprep.subr.mxu0 0.0
    %130 = vmatpush1.msra.mxu0 0.0
    %131 = vmatprep.subr.mxu0 0.0
    %132 = vmatpush1.msra.mxu0 0.0
    %133 = vmatprep.subr.mxu0 0.0
    %134 = vmatpush1.msra.mxu0 0.0
    %135 = vmatprep.subr.mxu0 0.0
    %136 = vmatpush1.msra.mxu0 0.0
    %137 = vmatprep.subr.mxu0 0.0
    %138 = vmatpush1.msra.mxu0 0.0
    %139 = vmatprep.subr.mxu0 0.0
    %140 = vmatpush1.msra.mxu0 0.0
    %141 = vmatprep.subr.mxu0 0.0
    %142 = vmatpush1.msra.mxu0 0.0
    %143 = vmatprep.subr.mxu0 0.0
    %144 = vmatpush1.msra.mxu0 0.0
    %145 = vmatprep.subr.mxu0 0.0
    %146 = vmatpush1.msra.mxu0 %v85
    %147 = vmatprep.subr.mxu0 0.0
    %148 = vmatpush1.msra.mxu0 %v84
    %149 = vmatprep.subr.mxu0 0.0
    %150 = vmatpush1.msra.mxu0 %v83
    %151 = vmatprep.subr.mxu0 0.0
    %152 = vmatpush1.msra.mxu0 %v82
    %153 = vmatprep.subr.mxu0 0.0
    %154 = vmatpush1.msra.mxu0 %v81
    %155 = vmatprep.subr.mxu0 0.0
    %156 = vmatpush1.msra.mxu0 %v80
    %157 = vmatprep.subr.mxu0 0.0
    %158 = vmatpush2.msra.mxu0 0.0
    %159 = vmatprep.subr.mxu0 0.0
    %160 = vmatpush2.msra.mxu0 0.0
    %161 = vmatprep.subr.mxu0 0.0
    %162 = vmatpush2.msra.mxu0 0.0
    %163 = vmatprep.subr.mxu0 0.0
    %164 = vmatpush2.msra.mxu0 0.0
    %165 = vmatprep.subr.mxu0 0.0
    %166 = vmatpush2.msra.mxu0 0.0
    %167 = vmatprep.subr.mxu0 0.0
    %168 = vmatpush2.msra.mxu0 0.0
    %169 = vmatprep.subr.mxu0 0.0
    %170 = vmatpush2.msra.mxu0 0.0
    %171 = vmatprep.subr.mxu0 0.0
    %172 = vmatpush2.msra.mxu0 0.0
    %173 = vmatprep.subr.mxu0 0.0
    %174 = vmatpush2.msra.mxu0 0.0
    %175 = vmatprep.subr.mxu0 0.0
    %176 = vmatpush2.msra.mxu0 0.0
    %177 = vmatprep.subr.mxu0 0.0
    %178 = vmatpush2.msra.mxu0 0.0
    %179 = vmatprep.subr.mxu0 0.0
    %180 = vmatpush2.msra.mxu0 0.0
    %181 = vmatprep.subr.mxu0 0.0
    %182 = vmatpush2.msra.mxu0 0.0
    %183 = vmatprep.subr.mxu0 0.0
    %184 = vmatpush2.msra.mxu0 0.0
    %185 = vmatprep.subr.mxu0 0.0
    %186 = vmatpush2.msra.mxu0 0.0
    %187 = vmatprep.subr.mxu0 0.0
    %188 = vmatpush2.msra.mxu0 0.0
    %189 = vmatprep.mubr.f32.mxu0 0.0
    %190 = vmatmul.mubr.f32.gmra.mxu0 %v123
    %v191 = vpop.f32.mrf.mxu0
    %v192 = vadd.f32 %v119, %v191
    %v193 = vpop.f32.mrf.mxu0
    %194 = vdwg.mxu0
    %v196 = vlaneseq
    %v197 = vshrl.u32 %v196, 7
    %v198 = vsub.s32 0, %v197
    %v199 = vrot.slane %v103, %v198
    %201 = vmatprep.subr.mxu0 0.0
    %202 = vmatpush1.msra.mxu0 %v102
    %203 = vmatprep.subr.mxu0 0.0
    %204 = vmatpush1.msra.mxu0 %v101
    %205 = vmatprep.subr.mxu0 0.0
    %206 = vmatpush1.msra.mxu0 %v100
    %207 = vmatprep.subr.mxu0 0.0
    %208 = vmatpush1.msra.mxu0 %v99
    %209 = vmatprep.subr.mxu0 0.0
    %210 = vmatpush1.msra.mxu0 %v98
    %211 = vmatprep.subr.mxu0 0.0
    %212 = vmatpush1.msra.mxu0 %v97
    %213 = vmatprep.subr.mxu0 0.0
    %214 = vmatpush1.msra.mxu0 %v96
    %215 = vmatprep.subr.mxu0 0.0
    %216 = vmatpush1.msra.mxu0 %v95
    %217 = vmatprep.subr.mxu0 0.0
    %218 = vmatpush1.msra.mxu0 %v94
    %219 = vmatprep.subr.mxu0 0.0
    %220 = vmatpush1.msra.mxu0 %v93
    %221 = vmatprep.subr.mxu0 0.0
    %222 = vmatpush1.msra.mxu0 %v92
    %223 = vmatprep.subr.mxu0 0.0
    %224 = vmatpush1.msra.mxu0 %v91
    %225 = vmatprep.subr.mxu0 0.0
    %226 = vmatpush1.msra.mxu0 %v90
    %227 = vmatprep.subr.mxu0 0.0
    %228 = vmatpush1.msra.mxu0 %v89
    %229 = vmatprep.subr.mxu0 0.0
    %230 = vmatpush1.msra.mxu0 %v88
    %231 = vmatprep.subr.mxu0 0.0
    %232 = vmatpush1.msra.mxu0 %v87
    %233 = vmatprep.subr.mxu0 0.0
    %234 = vmatpush2.msra.mxu0 0.0
    %235 = vmatprep.subr.mxu0 0.0
    %236 = vmatpush2.msra.mxu0 0.0
    %237 = vmatprep.subr.mxu0 0.0
    %238 = vmatpush2.msra.mxu0 0.0
    %239 = vmatprep.subr.mxu0 0.0
    %240 = vmatpush2.msra.mxu0 0.0
    %241 = vmatprep.subr.mxu0 0.0
    %242 = vmatpush2.msra.mxu0 0.0
    %243 = vmatprep.subr.mxu0 0.0
    %244 = vmatpush2.msra.mxu0 0.0
    %245 = vmatprep.subr.mxu0 0.0
    %246 = vmatpush2.msra.mxu0 0.0
    %247 = vmatprep.subr.mxu0 0.0
    %248 = vmatpush2.msra.mxu0 0.0
    %249 = vmatprep.subr.mxu0 0.0
    %250 = vmatpush2.msra.mxu0 0.0
    %251 = vmatprep.subr.mxu0 0.0
    %252 = vmatpush2.msra.mxu0 0.0
    %253 = vmatprep.subr.mxu0 0.0
    %254 = vmatpush2.msra.mxu0 0.0
    %255 = vmatprep.subr.mxu0 0.0
    %256 = vmatpush2.msra.mxu0 0.0
    %257 = vmatprep.subr.mxu0 0.0
    %258 = vmatpush2.msra.mxu0 0.0
    %259 = vmatprep.subr.mxu0 0.0
    %260 = vmatpush2.msra.mxu0 0.0
    %261 = vmatprep.subr.mxu0 0.0
    %262 = vmatpush2.msra.mxu0 0.0
    %263 = vmatprep.subr.mxu0 0.0
    %264 = vmatpush2.msra.mxu0 0.0
    %265 = vmatprep.mubr.f32.mxu0 0.0
    %266 = vmatmul.mubr.f32.gmra.mxu0 %v192
    %v267 = vpop.f32.mrf.mxu0
    %v268 = vadd.f32 %v199, %v267
    %v269 = vpop.f32.mrf.mxu0
    %270 = vdwg.mxu0
    %vm271 = vcmask 1041408
    %v272 = vsel %vm271, %v268, -inf
    %273 = vmax.xlane.f32.xlu0 %v272
    %v274 = vpop.xlane.xlu0 %273
    %v275 = vsub.f32 %v268, %v274
    %v276 = vmul.f32 %v275, 1.442695
    %v277 = vpow.pop %v276
    %v278 = vsel %vm271, %v277, 0.0
    %279 = vadd.xlane.f32.xlu0 %v278
    %v280 = vpop.xlane.xlu0 %279
    %v281 = vlog2.pop %v280
    %v282 = vmul.f32 %v281, 0.6931472
    %v283 = vadd.f32 %v282, %v274
    %v284 = vsub.f32 %v268, %v283
    %285 = vst [vmem:[#allocation11] sm:$0x3] %v284
    %286 = vst [vmem:[#allocation12] sm:$0x3] %v192
    %s287 = scalar_lea.vmem [#allocation3], 2
    %v288 = vld [vmem:[%s287] sm:$0x3]
    %289 = vst.msk [vmem:[#allocation2] sm:$0x3] %vm106, %v288
    %291 = vrot.lane.b32.xlu0 %v192, 16
    %v292 = vpop.permute.xlu0 %291
    %294 = vst.msk [vmem:[#allocation2] sm:$0x3] %vm112, %v292
    %v295 = vld [vmem:[#allocation2] sm:$0x3]
    %v297 = vsel %vm121, %v295, 0
    %299 = vmatprep.subr.mxu0 0.0
    %300 = vmatpush1.msra.mxu0 0.0
    %301 = vmatprep.subr.mxu0 0.0
    %302 = vmatpush1.msra.mxu0 0.0
    %303 = vmatprep.subr.mxu0 0.0
    %304 = vmatpush1.msra.mxu0 0.0
    %305 = vmatprep.subr.mxu0 0.0
    %306 = vmatpush1.msra.mxu0 0.0
    %307 = vmatprep.subr.mxu0 0.0
    %308 = vmatpush1.msra.mxu0 0.0
    %309 = vmatprep.subr.mxu0 0.0
    %310 = vmatpush1.msra.mxu0 0.0
    %311 = vmatprep.subr.mxu0 0.0
    %312 = vmatpush1.msra.mxu0 0.0
    %313 = vmatprep.subr.mxu0 0.0
    %314 = vmatpush1.msra.mxu0 0.0
    %315 = vmatprep.subr.mxu0 0.0
    %316 = vmatpush1.msra.mxu0 0.0
    %317 = vmatprep.subr.mxu0 0.0
    %318 = vmatpush1.msra.mxu0 0.0
    %319 = vmatprep.subr.mxu0 0.0
    %320 = vmatpush1.msra.mxu0 %v85
    %321 = vmatprep.subr.mxu0 0.0
    %322 = vmatpush1.msra.mxu0 %v84
    %323 = vmatprep.subr.mxu0 0.0
    %324 = vmatpush1.msra.mxu0 %v83
    %325 = vmatprep.subr.mxu0 0.0
    %326 = vmatpush1.msra.mxu0 %v82
    %327 = vmatprep.subr.mxu0 0.0
    %328 = vmatpush1.msra.mxu0 %v81
    %329 = vmatprep.subr.mxu0 0.0
    %330 = vmatpush1.msra.mxu0 %v80
    %331 = vmatprep.subr.mxu0 0.0
    %332 = vmatpush2.msra.mxu0 0.0
    %333 = vmatprep.subr.mxu0 0.0
    %334 = vmatpush2.msra.mxu0 0.0
    %335 = vmatprep.subr.mxu0 0.0
    %336 = vmatpush2.msra.mxu0 0.0
    %337 = vmatprep.subr.mxu0 0.0
    %338 = vmatpush2.msra.mxu0 0.0
    %339 = vmatprep.subr.mxu0 0.0
    %340 = vmatpush2.msra.mxu0 0.0
    %341 = vmatprep.subr.mxu0 0.0
    %342 = vmatpush2.msra.mxu0 0.0
    %343 = vmatprep.subr.mxu0 0.0
    %344 = vmatpush2.msra.mxu0 0.0
    %345 = vmatprep.subr.mxu0 0.0
    %346 = vmatpush2.msra.mxu0 0.0
    %347 = vmatprep.subr.mxu0 0.0
    %348 = vmatpush2.msra.mxu0 0.0
    %349 = vmatprep.subr.mxu0 0.0
    %350 = vmatpush2.msra.mxu0 0.0
    %351 = vmatprep.subr.mxu0 0.0
    %352 = vmatpush2.msra.mxu0 0.0
    %353 = vmatprep.subr.mxu0 0.0
    %354 = vmatpush2.msra.mxu0 0.0
    %355 = vmatprep.subr.mxu0 0.0
    %356 = vmatpush2.msra.mxu0 0.0
    %357 = vmatprep.subr.mxu0 0.0
    %358 = vmatpush2.msra.mxu0 0.0
    %359 = vmatprep.subr.mxu0 0.0
    %360 = vmatpush2.msra.mxu0 0.0
    %361 = vmatprep.subr.mxu0 0.0
    %362 = vmatpush2.msra.mxu0 0.0
    %363 = vmatprep.mubr.f32.mxu0 0.0
    %364 = vmatmul.mubr.f32.gmra.mxu0 %v297
    %v365 = vpop.f32.mrf.mxu0
    %v366 = vadd.f32 %v119, %v365
    %v367 = vpop.f32.mrf.mxu0
    %368 = vdwg.mxu0
    %369 = vmatprep.subr.mxu0 0.0
    %370 = vmatpush1.msra.mxu0 %v102
    %371 = vmatprep.subr.mxu0 0.0
    %372 = vmatpush1.msra.mxu0 %v101
    %373 = vmatprep.subr.mxu0 0.0
    %374 = vmatpush1.msra.mxu0 %v100
    %375 = vmatprep.subr.mxu0 0.0
    %376 = vmatpush1.msra.mxu0 %v99
    %377 = vmatprep.subr.mxu0 0.0
    %378 = vmatpush1.msra.mxu0 %v98
    %379 = vmatprep.subr.mxu0 0.0
    %380 = vmatpush1.msra.mxu0 %v97
    %381 = vmatprep.subr.mxu0 0.0
    %382 = vmatpush1.msra.mxu0 %v96
    %383 = vmatprep.subr.mxu0 0.0
    %384 = vmatpush1.msra.mxu0 %v95
    %385 = vmatprep.subr.mxu0 0.0
    %386 = vmatpush1.msra.mxu0 %v94
    %387 = vmatprep.subr.mxu0 0.0
    %388 = vmatpush1.msra.mxu0 %v93
    %389 = vmatprep.subr.mxu0 0.0
    %390 = vmatpush1.msra.mxu0 %v92
    %391 = vmatprep.subr.mxu0 0.0
    %392 = vmatpush1.msra.mxu0 %v91
    %393 = vmatprep.subr.mxu0 0.0
    %394 = vmatpush1.msra.mxu0 %v90
    %395 = vmatprep.subr.mxu0 0.0
    %396 = vmatpush1.msra.mxu0 %v89
    %397 = vmatprep.subr.mxu0 0.0
    %398 = vmatpush1.msra.mxu0 %v88
    %399 = vmatprep.subr.mxu0 0.0
    %400 = vmatpush1.msra.mxu0 %v87
    %401 = vmatprep.subr.mxu0 0.0
    %402 = vmatpush2.msra.mxu0 0.0
    %403 = vmatprep.subr.mxu0 0.0
    %404 = vmatpush2.msra.mxu0 0.0
    %405 = vmatprep.subr.mxu0 0.0
    %406 = vmatpush2.msra.mxu0 0.0
    %407 = vmatprep.subr.mxu0 0.0
    %408 = vmatpush2.msra.mxu0 0.0
    %409 = vmatprep.subr.mxu0 0.0
    %410 = vmatpush2.msra.mxu0 0.0
    %411 = vmatprep.subr.mxu0 0.0
    %412 = vmatpush2.msra.mxu0 0.0
    %413 = vmatprep.subr.mxu0 0.0
    %414 = vmatpush2.msra.mxu0 0.0
    %415 = vmatprep.subr.mxu0 0.0
    %416 = vmatpush2.msra.mxu0 0.0
    %417 = vmatprep.subr.mxu0 0.0
    %418 = vmatpush2.msra.mxu0 0.0
    %419 = vmatprep.subr.mxu0 0.0
    %420 = vmatpush2.msra.mxu0 0.0
    %421 = vmatprep.subr.mxu0 0.0
    %422 = vmatpush2.msra.mxu0 0.0
    %423 = vmatprep.subr.mxu0 0.0
    %424 = vmatpush2.msra.mxu0 0.0
    %425 = vmatprep.subr.mxu0 0.0
    %426 = vmatpush2.msra.mxu0 0.0
    %427 = vmatprep.subr.mxu0 0.0
    %428 = vmatpush2.msra.mxu0 0.0
    %429 = vmatprep.subr.mxu0 0.0
    %430 = vmatpush2.msra.mxu0 0.0
    %431 = vmatprep.subr.mxu0 0.0
    %432 = vmatpush2.msra.mxu0 0.0
    %433 = vmatprep.mubr.f32.mxu0 0.0
    %434 = vmatmul.mubr.f32.gmra.mxu0 %v366
    %v435 = vpop.f32.mrf.mxu0
    %v436 = vadd.f32 %v199, %v435
    %v437 = vpop.f32.mrf.mxu0
    %438 = vdwg.mxu0
    %v439 = vsel %vm271, %v436, -inf
    %440 = vmax.xlane.f32.xlu0 %v439
    %v441 = vpop.xlane.xlu0 %440
    %v442 = vsub.f32 %v436, %v441
    %v443 = vmul.f32 %v442, 1.442695
    %v444 = vpow.pop %v443
    %v445 = vsel %vm271, %v444, 0.0
    %446 = vadd.xlane.f32.xlu0 %v445
    %v447 = vpop.xlane.xlu0 %446
    %v448 = vlog2.pop %v447
    %v449 = vmul.f32 %v448, 0.6931472
    %v450 = vadd.f32 %v449, %v441
    %v451 = vsub.f32 %v436, %v450
    %s452 = scalar_lea.vmem [#allocation11], 2
    %453 = vst [vmem:[%s452] sm:$0x3] %v451
    %s454 = scalar_lea.vmem [#allocation12], 2
    %455 = vst [vmem:[%s454] sm:$0x3] %v366
    %s456 = scalar_lea.vmem [#allocation3], 4
    %v457 = vld [vmem:[%s456] sm:$0x3]
    %458 = vst.msk [vmem:[#allocation2] sm:$0x3] %vm106, %v457
    %460 = vrot.lane.b32.xlu0 %v366, 16
    %v461 = vpop.permute.xlu0 %460
    %463 = vst.msk [vmem:[#allocation2] sm:$0x3] %vm112, %v461
    %v464 = vld [vmem:[#allocation2] sm:$0x3]
    %v466 = vsel %vm121, %v464, 0
    %468 = vmatprep.subr.mxu0 0.0
    %469 = vmatpush1.msra.mxu0 0.0
    %470 = vmatprep.subr.mxu0 0.0
    %471 = vmatpush1.msra.mxu0 0.0
    %472 = vmatprep.subr.mxu0 0.0
    %473 = vmatpush1.msra.mxu0 0.0
    %474 = vmatprep.subr.mxu0 0.0
    %475 = vmatpush1.msra.mxu0 0.0
    %476 = vmatprep.subr.mxu0 0.0
    %477 = vmatpush1.msra.mxu0 0.0
    %478 = vmatprep.subr.mxu0 0.0
    %479 = vmatpush1.msra.mxu0 0.0
    %480 = vmatprep.subr.mxu0 0.0
    %481 = vmatpush1.msra.mxu0 0.0
    %482 = vmatprep.subr.mxu0 0.0
    %483 = vmatpush1.msra.mxu0 0.0
    %484 = vmatprep.subr.mxu0 0.0
    %485 = vmatpush1.msra.mxu0 0.0
    %486 = vmatprep.subr.mxu0 0.0
    %487 = vmatpush1.msra.mxu0 0.0
    %488 = vmatprep.subr.mxu0 0.0
    %489 = vmatpush1.msra.mxu0 %v85
    %490 = vmatprep.subr.mxu0 0.0
    %491 = vmatpush1.msra.mxu0 %v84
    %492 = vmatprep.subr.mxu0 0.0
    %493 = vmatpush1.msra.mxu0 %v83
    %494 = vmatprep.subr.mxu0 0.0
    %495 = vmatpush1.msra.mxu0 %v82
    %496 = vmatprep.subr.mxu0 0.0
    %497 = vmatpush1.msra.mxu0 %v81
    %498 = vmatprep.subr.mxu0 0.0
    %499 = vmatpush1.msra.mxu0 %v80
    %500 = vmatprep.subr.mxu0 0.0
    %501 = vmatpush2.msra.mxu0 0.0
    %502 = vmatprep.subr.mxu0 0.0
    %503 = vmatpush2.msra.mxu0 0.0
    %504 = vmatprep.subr.mxu0 0.0
    %505 = vmatpush2.msra.mxu0 0.0
    %506 = vmatprep.subr.mxu0 0.0
    %507 = vmatpush2.msra.mxu0 0.0
    %508 = vmatprep.subr.mxu0 0.0
    %509 = vmatpush2.msra.mxu0 0.0
    %510 = vmatprep.subr.mxu0 0.0
    %511 = vmatpush2.msra.mxu0 0.0
    %512 = vmatprep.subr.mxu0 0.0
    %513 = vmatpush2.msra.mxu0 0.0
    %514 = vmatprep.subr.mxu0 0.0
    %515 = vmatpush2.msra.mxu0 0.0
    %516 = vmatprep.subr.mxu0 0.0
    %517 = vmatpush2.msra.mxu0 0.0
    %518 = vmatprep.subr.mxu0 0.0
    %519 = vmatpush2.msra.mxu0 0.0
    %520 = vmatprep.subr.mxu0 0.0
    %521 = vmatpush2.msra.mxu0 0.0
    %522 = vmatprep.subr.mxu0 0.0
    %523 = vmatpush2.msra.mxu0 0.0
    %524 = vmatprep.subr.mxu0 0.0
    %525 = vmatpush2.msra.mxu0 0.0
    %526 = vmatprep.subr.mxu0 0.0
    %527 = vmatpush2.msra.mxu0 0.0
    %528 = vmatprep.subr.mxu0 0.0
    %529 = vmatpush2.msra.mxu0 0.0
    %530 = vmatprep.subr.mxu0 0.0
    %531 = vmatpush2.msra.mxu0 0.0
    %532 = vmatprep.mubr.f32.mxu0 0.0
    %533 = vmatmul.mubr.f32.gmra.mxu0 %v466
    %v534 = vpop.f32.mrf.mxu0
    %v535 = vadd.f32 %v119, %v534
    %v536 = vpop.f32.mrf.mxu0
    %537 = vdwg.mxu0
    %538 = vmatprep.subr.mxu0 0.0
    %539 = vmatpush1.msra.mxu0 %v102
    %540 = vmatprep.subr.mxu0 0.0
    %541 = vmatpush1.msra.mxu0 %v101
    %542 = vmatprep.subr.mxu0 0.0
    %543 = vmatpush1.msra.mxu0 %v100
    %544 = vmatprep.subr.mxu0 0.0
    %545 = vmatpush1.msra.mxu0 %v99
    %546 = vmatprep.subr.mxu0 0.0
    %547 = vmatpush1.msra.mxu0 %v98
    %548 = vmatprep.subr.mxu0 0.0
    %549 = vmatpush1.msra.mxu0 %v97
    %550 = vmatprep.subr.mxu0 0.0
    %551 = vmatpush1.msra.mxu0 %v96
    %552 = vmatprep.subr.mxu0 0.0
    %553 = vmatpush1.msra.mxu0 %v95
    %554 = vmatprep.subr.mxu0 0.0
    %555 = vmatpush1.msra.mxu0 %v94
    %556 = vmatprep.subr.mxu0 0.0
    %557 = vmatpush1.msra.mxu0 %v93
    %558 = vmatprep.subr.mxu0 0.0
    %559 = vmatpush1.msra.mxu0 %v92
    %560 = vmatprep.subr.mxu0 0.0
    %561 = vmatpush1.msra.mxu0 %v91
    %562 = vmatprep.subr.mxu0 0.0
    %563 = vmatpush1.msra.mxu0 %v90
    %564 = vmatprep.subr.mxu0 0.0
    %565 = vmatpush1.msra.mxu0 %v89
    %566 = vmatprep.subr.mxu0 0.0
    %567 = vmatpush1.msra.mxu0 %v88
    %568 = vmatprep.subr.mxu0 0.0
    %569 = vmatpush1.msra.mxu0 %v87
    %570 = vmatprep.subr.mxu0 0.0
    %571 = vmatpush2.msra.mxu0 0.0
    %572 = vmatprep.subr.mxu0 0.0
    %573 = vmatpush2.msra.mxu0 0.0
    %574 = vmatprep.subr.mxu0 0.0
    %575 = vmatpush2.msra.mxu0 0.0
    %576 = vmatprep.subr.mxu0 0.0
    %577 = vmatpush2.msra.mxu0 0.0
    %578 = vmatprep.subr.mxu0 0.0
    %579 = vmatpush2.msra.mxu0 0.0
    %580 = vmatprep.subr.mxu0 0.0
    %581 = vmatpush2.msra.mxu0 0.0
    %582 = vmatprep.subr.mxu0 0.0
    %583 = vmatpush2.msra.mxu0 0.0
    %584 = vmatprep.subr.mxu0 0.0
    %585 = vmatpush2.msra.mxu0 0.0
    %586 = vmatprep.subr.mxu0 0.0
    %587 = vmatpush2.msra.mxu0 0.0
    %588 = vmatprep.subr.mxu0 0.0
    %589 = vmatpush2.msra.mxu0 0.0
    %590 = vmatprep.subr.mxu0 0.0
    %591 = vmatpush2.msra.mxu0 0.0
    %592 = vmatprep.subr.mxu0 0.0
    %593 = vmatpush2.msra.mxu0 0.0
    %594 = vmatprep.subr.mxu0 0.0
    %595 = vmatpush2.msra.mxu0 0.0
    %596 = vmatprep.subr.mxu0 0.0
    %597 = vmatpush2.msra.mxu0 0.0
    %598 = vmatprep.subr.mxu0 0.0
    %599 = vmatpush2.msra.mxu0 0.0
    %600 = vmatprep.subr.mxu0 0.0
    %601 = vmatpush2.msra.mxu0 0.0
    %602 = vmatprep.mubr.f32.mxu0 0.0
    %603 = vmatmul.mubr.f32.gmra.mxu0 %v535
    %v604 = vpop.f32.mrf.mxu0
    %v605 = vadd.f32 %v199, %v604
    %v606 = vpop.f32.mrf.mxu0
    %607 = vdwg.mxu0
    %v608 = vsel %vm271, %v605, -inf
    %609 = vmax.xlane.f32.xlu0 %v608
    %v610 = vpop.xlane.xlu0 %609
    %v611 = vsub.f32 %v605, %v610
    %v612 = vmul.f32 %v611, 1.442695
    %v613 = vpow.pop %v612
    %v614 = vsel %vm271, %v613, 0.0
    %615 = vadd.xlane.f32.xlu0 %v614
    %v616 = vpop.xlane.xlu0 %615
    %v617 = vlog2.pop %v616
    %v618 = vmul.f32 %v617, 0.6931472
    %v619 = vadd.f32 %v618, %v610
    %v620 = vsub.f32 %v605, %v619
    %s621 = scalar_lea.vmem [#allocation11], 4
    %622 = vst [vmem:[%s621] sm:$0x3] %v620
    %s623 = scalar_lea.vmem [#allocation12], 4
    %624 = vst [vmem:[%s623] sm:$0x3] %v535
    %s625 = scalar_lea.vmem [#allocation3], 6
    %v626 = vld [vmem:[%s625] sm:$0x3]
    %627 = vst.msk [vmem:[#allocation2] sm:$0x3] %vm106, %v626
    %629 = vrot.lane.b32.xlu0 %v535, 16
    %v630 = vpop.permute.xlu0 %629
    %632 = vst.msk [vmem:[#allocation2] sm:$0x3] %vm112, %v630
    %v633 = vld [vmem:[#allocation2] sm:$0x3]
    %v635 = vsel %vm121, %v633, 0
    %637 = vmatprep.subr.mxu0 0.0
    %638 = vmatpush1.msra.mxu0 0.0
    %639 = vmatprep.subr.mxu0 0.0
    %640 = vmatpush1.msra.mxu0 0.0
    %641 = vmatprep.subr.mxu0 0.0
    %642 = vmatpush1.msra.mxu0 0.0
    %643 = vmatprep.subr.mxu0 0.0
    %644 = vmatpush1.msra.mxu0 0.0
    %645 = vmatprep.subr.mxu0 0.0
    %646 = vmatpush1.msra.mxu0 0.0
    %647 = vmatprep.subr.mxu0 0.0
    %648 = vmatpush1.msra.mxu0 0.0
    %649 = vmatprep.subr.mxu0 0.0
    %650 = vmatpush1.msra.mxu0 0.0
    %651 = vmatprep.subr.mxu0 0.0
    %652 = vmatpush1.msra.mxu0 0.0
    %653 = vmatprep.subr.mxu0 0.0
    %654 = vmatpush1.msra.mxu0 0.0
    %655 = vmatprep.subr.mxu0 0.0
    %656 = vmatpush1.msra.mxu0 0.0
    %657 = vmatprep.subr.mxu0 0.0
    %658 = vmatpush1.msra.mxu0 %v85
    %659 = vmatprep.subr.mxu0 0.0
    %660 = vmatpush1.msra.mxu0 %v84
    %661 = vmatprep.subr.mxu0 0.0
    %662 = vmatpush1.msra.mxu0 %v83
    %663 = vmatprep.subr.mxu0 0.0
    %664 = vmatpush1.msra.mxu0 %v82
    %665 = vmatprep.subr.mxu0 0.0
    %666 = vmatpush1.msra.mxu0 %v81
    %667 = vmatprep.subr.mxu0 0.0
    %668 = vmatpush1.msra.mxu0 %v80
    %669 = vmatprep.subr.mxu0 0.0
    %670 = vmatpush2.msra.mxu0 0.0
    %671 = vmatprep.subr.mxu0 0.0
    %672 = vmatpush2.msra.mxu0 0.0
    %673 = vmatprep.subr.mxu0 0.0
    %674 = vmatpush2.msra.mxu0 0.0
    %675 = vmatprep.subr.mxu0 0.0
    %676 = vmatpush2.msra.mxu0 0.0
    %677 = vmatprep.subr.mxu0 0.0
    %678 = vmatpush2.msra.mxu0 0.0
    %679 = vmatprep.subr.mxu0 0.0
    %680 = vmatpush2.msra.mxu0 0.0
    %681 = vmatprep.subr.mxu0 0.0
    %682 = vmatpush2.msra.mxu0 0.0
    %683 = vmatprep.subr.mxu0 0.0
    %684 = vmatpush2.msra.mxu0 0.0
    %685 = vmatprep.subr.mxu0 0.0
    %686 = vmatpush2.msra.mxu0 0.0
    %687 = vmatprep.subr.mxu0 0.0
    %688 = vmatpush2.msra.mxu0 0.0
    %689 = vmatprep.subr.mxu0 0.0
    %690 = vmatpush2.msra.mxu0 0.0
    %691 = vmatprep.subr.mxu0 0.0
    %692 = vmatpush2.msra.mxu0 0.0
    %693 = vmatprep.subr.mxu0 0.0
    %694 = vmatpush2.msra.mxu0 0.0
    %695 = vmatprep.subr.mxu0 0.0
    %696 = vmatpush2.msra.mxu0 0.0
    %697 = vmatprep.subr.mxu0 0.0
    %698 = vmatpush2.msra.mxu0 0.0
    %699 = vmatprep.subr.mxu0 0.0
    %700 = vmatpush2.msra.mxu0 0.0
    %701 = vmatprep.mubr.f32.mxu0 0.0
    %702 = vmatmul.mubr.f32.gmra.mxu0 %v635
    %v703 = vpop.f32.mrf.mxu0
    %v704 = vadd.f32 %v119, %v703
    %v705 = vpop.f32.mrf.mxu0
    %706 = vdwg.mxu0
    %707 = vmatprep.subr.mxu0 0.0
    %708 = vmatpush1.msra.mxu0 %v102
    %709 = vmatprep.subr.mxu0 0.0
    %710 = vmatpush1.msra.mxu0 %v101
    %711 = vmatprep.subr.mxu0 0.0
    %712 = vmatpush1.msra.mxu0 %v100
    %713 = vmatprep.subr.mxu0 0.0
    %714 = vmatpush1.msra.mxu0 %v99
    %715 = vmatprep.subr.mxu0 0.0
    %716 = vmatpush1.msra.mxu0 %v98
    %717 = vmatprep.subr.mxu0 0.0
    %718 = vmatpush1.msra.mxu0 %v97
    %719 = vmatprep.subr.mxu0 0.0
    %720 = vmatpush1.msra.mxu0 %v96
    %721 = vmatprep.subr.mxu0 0.0
    %722 = vmatpush1.msra.mxu0 %v95
    %723 = vmatprep.subr.mxu0 0.0
    %724 = vmatpush1.msra.mxu0 %v94
    %725 = vmatprep.subr.mxu0 0.0
    %726 = vmatpush1.msra.mxu0 %v93
    %727 = vmatprep.subr.mxu0 0.0
    %728 = vmatpush1.msra.mxu0 %v92
    %729 = vmatprep.subr.mxu0 0.0
    %730 = vmatpush1.msra.mxu0 %v91
    %731 = vmatprep.subr.mxu0 0.0
    %732 = vmatpush1.msra.mxu0 %v90
    %733 = vmatprep.subr.mxu0 0.0
    %734 = vmatpush1.msra.mxu0 %v89
    %735 = vmatprep.subr.mxu0 0.0
    %736 = vmatpush1.msra.mxu0 %v88
    %737 = vmatprep.subr.mxu0 0.0
    %738 = vmatpush1.msra.mxu0 %v87
    %739 = vmatprep.subr.mxu0 0.0
    %740 = vmatpush2.msra.mxu0 0.0
    %741 = vmatprep.subr.mxu0 0.0
    %742 = vmatpush2.msra.mxu0 0.0
    %743 = vmatprep.subr.mxu0 0.0
    %744 = vmatpush2.msra.mxu0 0.0
    %745 = vmatprep.subr.mxu0 0.0
    %746 = vmatpush2.msra.mxu0 0.0
    %747 = vmatprep.subr.mxu0 0.0
    %748 = vmatpush2.msra.mxu0 0.0
    %749 = vmatprep.subr.mxu0 0.0
    %750 = vmatpush2.msra.mxu0 0.0
    %751 = vmatprep.subr.mxu0 0.0
    %752 = vmatpush2.msra.mxu0 0.0
    %753 = vmatprep.subr.mxu0 0.0
    %754 = vmatpush2.msra.mxu0 0.0
    %755 = vmatprep.subr.mxu0 0.0
    %756 = vmatpush2.msra.mxu0 0.0
    %757 = vmatprep.subr.mxu0 0.0
    %758 = vmatpush2.msra.mxu0 0.0
    %759 = vmatprep.subr.mxu0 0.0
    %760 = vmatpush2.msra.mxu0 0.0
    %761 = vmatprep.subr.mxu0 0.0
    %762 = vmatpush2.msra.mxu0 0.0
    %763 = vmatprep.subr.mxu0 0.0
    %764 = vmatpush2.msra.mxu0 0.0
    %765 = vmatprep.subr.mxu0 0.0
    %766 = vmatpush2.msra.mxu0 0.0
    %767 = vmatprep.subr.mxu0 0.0
    %768 = vmatpush2.msra.mxu0 0.0
    %769 = vmatprep.subr.mxu0 0.0
    %770 = vmatpush2.msra.mxu0 0.0
    %771 = vmatprep.mubr.f32.mxu0 0.0
    %772 = vmatmul.mubr.f32.gmra.mxu0 %v704
    %v773 = vpop.f32.mrf.mxu0
    %v774 = vadd.f32 %v199, %v773
    %v775 = vpop.f32.mrf.mxu0
    %776 = vdwg.mxu0
    %v777 = vsel %vm271, %v774, -inf
    %778 = vmax.xlane.f32.xlu0 %v777
    %v779 = vpop.xlane.xlu0 %778
    %v780 = vsub.f32 %v774, %v779
    %v781 = vmul.f32 %v780, 1.442695
    %v782 = vpow.pop %v781
    %v783 = vsel %vm271, %v782, 0.0
    %784 = vadd.xlane.f32.xlu0 %v783
    %v785 = vpop.xlane.xlu0 %784
    %v786 = vlog2.pop %v785
    %v787 = vmul.f32 %v786, 0.6931472
    %v788 = vadd.f32 %v787, %v779
    %v789 = vsub.f32 %v774, %v788
    %s790 = scalar_lea.vmem [#allocation11], 6
    %791 = vst [vmem:[%s790] sm:$0x3] %v789
    %s792 = scalar_lea.vmem [#allocation12], 6
    %793 = vst [vmem:[%s792] sm:$0x3] %v704
    %s794 = scalar_lea.vmem [#allocation3], 8
    %v795 = vld [vmem:[%s794] sm:$0x3]
    %796 = vst.msk [vmem:[#allocation2] sm:$0x3] %vm106, %v795
    %798 = vrot.lane.b32.xlu0 %v704, 16
    %v799 = vpop.permute.xlu0 %798
    %801 = vst.msk [vmem:[#allocation2] sm:$0x3] %vm112, %v799
    %v802 = vld [vmem:[#allocation2] sm:$0x3]
    %v804 = vsel %vm121, %v802, 0
    %806 = vmatprep.subr.mxu0 0.0
    %807 = vmatpush1.msra.mxu0 0.0
    %808 = vmatprep.subr.mxu0 0.0
    %809 = vmatpush1.msra.mxu0 0.0
    %810 = vmatprep.subr.mxu0 0.0
    %811 = vmatpush1.msra.mxu0 0.0
    %812 = vmatprep.subr.mxu0 0.0
    %813 = vmatpush1.msra.mxu0 0.0
    %814 = vmatprep.subr.mxu0 0.0
    %815 = vmatpush1.msra.mxu0 0.0
    %816 = vmatprep.subr.mxu0 0.0
    %817 = vmatpush1.msra.mxu0 0.0
    %818 = vmatprep.subr.mxu0 0.0
    %819 = vmatpush1.msra.mxu0 0.0
    %820 = vmatprep.subr.mxu0 0.0
    %821 = vmatpush1.msra.mxu0 0.0
    %822 = vmatprep.subr.mxu0 0.0
    %823 = vmatpush1.msra.mxu0 0.0
    %824 = vmatprep.subr.mxu0 0.0
    %825 = vmatpush1.msra.mxu0 0.0
    %826 = vmatprep.subr.mxu0 0.0
    %827 = vmatpush1.msra.mxu0 %v85
    %828 = vmatprep.subr.mxu0 0.0
    %829 = vmatpush1.msra.mxu0 %v84
    %830 = vmatprep.subr.mxu0 0.0
    %831 = vmatpush1.msra.mxu0 %v83
    %832 = vmatprep.subr.mxu0 0.0
    %833 = vmatpush1.msra.mxu0 %v82
    %834 = vmatprep.subr.mxu0 0.0
    %835 = vmatpush1.msra.mxu0 %v81
    %836 = vmatprep.subr.mxu0 0.0
    %837 = vmatpush1.msra.mxu0 %v80
    %838 = vmatprep.subr.mxu0 0.0
    %839 = vmatpush2.msra.mxu0 0.0
    %840 = vmatprep.subr.mxu0 0.0
    %841 = vmatpush2.msra.mxu0 0.0
    %842 = vmatprep.subr.mxu0 0.0
    %843 = vmatpush2.msra.mxu0 0.0
    %844 = vmatprep.subr.mxu0 0.0
    %845 = vmatpush2.msra.mxu0 0.0
    %846 = vmatprep.subr.mxu0 0.0
    %847 = vmatpush2.msra.mxu0 0.0
    %848 = vmatprep.subr.mxu0 0.0
    %849 = vmatpush2.msra.mxu0 0.0
    %850 = vmatprep.subr.mxu0 0.0
    %851 = vmatpush2.msra.mxu0 0.0
    %852 = vmatprep.subr.mxu0 0.0
    %853 = vmatpush2.msra.mxu0 0.0
    %854 = vmatprep.subr.mxu0 0.0
    %855 = vmatpush2.msra.mxu0 0.0
    %856 = vmatprep.subr.mxu0 0.0
    %857 = vmatpush2.msra.mxu0 0.0
    %858 = vmatprep.subr.mxu0 0.0
    %859 = vmatpush2.msra.mxu0 0.0
    %860 = vmatprep.subr.mxu0 0.0
    %861 = vmatpush2.msra.mxu0 0.0
    %862 = vmatprep.subr.mxu0 0.0
    %863 = vmatpush2.msra.mxu0 0.0
    %864 = vmatprep.subr.mxu0 0.0
    %865 = vmatpush2.msra.mxu0 0.0
    %866 = vmatprep.subr.mxu0 0.0
    %867 = vmatpush2.msra.mxu0 0.0
    %868 = vmatprep.subr.mxu0 0.0
    %869 = vmatpush2.msra.mxu0 0.0
    %870 = vmatprep.mubr.f32.mxu0 0.0
    %871 = vmatmul.mubr.f32.gmra.mxu0 %v804
    %v872 = vpop.f32.mrf.mxu0
    %v873 = vadd.f32 %v119, %v872
    %v874 = vpop.f32.mrf.mxu0
    %875 = vdwg.mxu0
    %876 = vmatprep.subr.mxu0 0.0
    %877 = vmatpush1.msra.mxu0 %v102
    %878 = vmatprep.subr.mxu0 0.0
    %879 = vmatpush1.msra.mxu0 %v101
    %880 = vmatprep.subr.mxu0 0.0
    %881 = vmatpush1.msra.mxu0 %v100
    %882 = vmatprep.subr.mxu0 0.0
    %883 = vmatpush1.msra.mxu0 %v99
    %884 = vmatprep.subr.mxu0 0.0
    %885 = vmatpush1.msra.mxu0 %v98
    %886 = vmatprep.subr.mxu0 0.0
    %887 = vmatpush1.msra.mxu0 %v97
    %888 = vmatprep.subr.mxu0 0.0
    %889 = vmatpush1.msra.mxu0 %v96
    %890 = vmatprep.subr.mxu0 0.0
    %891 = vmatpush1.msra.mxu0 %v95
    %892 = vmatprep.subr.mxu0 0.0
    %893 = vmatpush1.msra.mxu0 %v94
    %894 = vmatprep.subr.mxu0 0.0
    %895 = vmatpush1.msra.mxu0 %v93
    %896 = vmatprep.subr.mxu0 0.0
    %897 = vmatpush1.msra.mxu0 %v92
    %898 = vmatprep.subr.mxu0 0.0
    %899 = vmatpush1.msra.mxu0 %v91
    %900 = vmatprep.subr.mxu0 0.0
    %901 = vmatpush1.msra.mxu0 %v90
    %902 = vmatprep.subr.mxu0 0.0
    %903 = vmatpush1.msra.mxu0 %v89
    %904 = vmatprep.subr.mxu0 0.0
    %905 = vmatpush1.msra.mxu0 %v88
    %906 = vmatprep.subr.mxu0 0.0
    %907 = vmatpush1.msra.mxu0 %v87
    %908 = vmatprep.subr.mxu0 0.0
    %909 = vmatpush2.msra.mxu0 0.0
    %910 = vmatprep.subr.mxu0 0.0
    %911 = vmatpush2.msra.mxu0 0.0
    %912 = vmatprep.subr.mxu0 0.0
    %913 = vmatpush2.msra.mxu0 0.0
    %914 = vmatprep.subr.mxu0 0.0
    %915 = vmatpush2.msra.mxu0 0.0
    %916 = vmatprep.subr.mxu0 0.0
    %917 = vmatpush2.msra.mxu0 0.0
    %918 = vmatprep.subr.mxu0 0.0
    %919 = vmatpush2.msra.mxu0 0.0
    %920 = vmatprep.subr.mxu0 0.0
    %921 = vmatpush2.msra.mxu0 0.0
    %922 = vmatprep.subr.mxu0 0.0
    %923 = vmatpush2.msra.mxu0 0.0
    %924 = vmatprep.subr.mxu0 0.0
    %925 = vmatpush2.msra.mxu0 0.0
    %926 = vmatprep.subr.mxu0 0.0
    %927 = vmatpush2.msra.mxu0 0.0
    %928 = vmatprep.subr.mxu0 0.0
    %929 = vmatpush2.msra.mxu0 0.0
    %930 = vmatprep.subr.mxu0 0.0
    %931 = vmatpush2.msra.mxu0 0.0
    %932 = vmatprep.subr.mxu0 0.0
    %933 = vmatpush2.msra.mxu0 0.0
    %934 = vmatprep.subr.mxu0 0.0
    %935 = vmatpush2.msra.mxu0 0.0
    %936 = vmatprep.subr.mxu0 0.0
    %937 = vmatpush2.msra.mxu0 0.0
    %938 = vmatprep.subr.mxu0 0.0
    %939 = vmatpush2.msra.mxu0 0.0
    %940 = vmatprep.mubr.f32.mxu0 0.0
    %941 = vmatmul.mubr.f32.gmra.mxu0 %v873
    %v942 = vpop.f32.mrf.mxu0
    %v943 = vadd.f32 %v199, %v942
    %v944 = vpop.f32.mrf.mxu0
    %945 = vdwg.mxu0
    %v946 = vsel %vm271, %v943, -inf
    %947 = vmax.xlane.f32.xlu0 %v946
    %v948 = vpop.xlane.xlu0 %947
    %v949 = vsub.f32 %v943, %v948
    %v950 = vmul.f32 %v949, 1.442695
    %v951 = vpow.pop %v950
    %v952 = vsel %vm271, %v951, 0.0
    %953 = vadd.xlane.f32.xlu0 %v952
    %v954 = vpop.xlane.xlu0 %953
    %v955 = vlog2.pop %v954
    %v956 = vmul.f32 %v955, 0.6931472
    %v957 = vadd.f32 %v956, %v948
    %v958 = vsub.f32 %v943, %v957
    %s959 = scalar_lea.vmem [#allocation11], 8
    %960 = vst [vmem:[%s959] sm:$0x3] %v958
    %s961 = scalar_lea.vmem [#allocation12], 8
    %962 = vst [vmem:[%s961] sm:$0x3] %v873
    %s963 = scalar_lea.vmem [#allocation3], 10
    %v964 = vld [vmem:[%s963] sm:$0x3]
    %965 = vst.msk [vmem:[#allocation2] sm:$0x3] %vm106, %v964
    %967 = vrot.lane.b32.xlu0 %v873, 16
    %v968 = vpop.permute.xlu0 %967
    %970 = vst.msk [vmem:[#allocation2] sm:$0x3] %vm112, %v968
    %v971 = vld [vmem:[#allocation2] sm:$0x3]
    %v973 = vsel %vm121, %v971, 0
    %975 = vmatprep.subr.mxu0 0.0
    %976 = vmatpush1.msra.mxu0 0.0
    %977 = vmatprep.subr.mxu0 0.0
    %978 = vmatpush1.msra.mxu0 0.0
    %979 = vmatprep.subr.mxu0 0.0
    %980 = vmatpush1.msra.mxu0 0.0
    %981 = vmatprep.subr.mxu0 0.0
    %982 = vmatpush1.msra.mxu0 0.0
    %983 = vmatprep.subr.mxu0 0.0
    %984 = vmatpush1.msra.mxu0 0.0
    %985 = vmatprep.subr.mxu0 0.0
    %986 = vmatpush1.msra.mxu0 0.0
    %987 = vmatprep.subr.mxu0 0.0
    %988 = vmatpush1.msra.mxu0 0.0
    %989 = vmatprep.subr.mxu0 0.0
    %990 = vmatpush1.msra.mxu0 0.0
    %991 = vmatprep.subr.mxu0 0.0
    %992 = vmatpush1.msra.mxu0 0.0
    %993 = vmatprep.subr.mxu0 0.0
    %994 = vmatpush1.msra.mxu0 0.0
    %995 = vmatprep.subr.mxu0 0.0
    %996 = vmatpush1.msra.mxu0 %v85
    %997 = vmatprep.subr.mxu0 0.0
    %998 = vmatpush1.msra.mxu0 %v84
    %999 = vmatprep.subr.mxu0 0.0
    %1000 = vmatpush1.msra.mxu0 %v83
    %1001 = vmatprep.subr.mxu0 0.0
    %1002 = vmatpush1.msra.mxu0 %v82
    %1003 = vmatprep.subr.mxu0 0.0
    %1004 = vmatpush1.msra.mxu0 %v81
    %1005 = vmatprep.subr.mxu0 0.0
    %1006 = vmatpush1.msra.mxu0 %v80
    %1007 = vmatprep.subr.mxu0 0.0
    %1008 = vmatpush2.msra.mxu0 0.0
    %1009 = vmatprep.subr.mxu0 0.0
    %1010 = vmatpush2.msra.mxu0 0.0
    %1011 = vmatprep.subr.mxu0 0.0
    %1012 = vmatpush2.msra.mxu0 0.0
    %1013 = vmatprep.subr.mxu0 0.0
    %1014 = vmatpush2.msra.mxu0 0.0
    %1015 = vmatprep.subr.mxu0 0.0
    %1016 = vmatpush2.msra.mxu0 0.0
    %1017 = vmatprep.subr.mxu0 0.0
    %1018 = vmatpush2.msra.mxu0 0.0
    %1019 = vmatprep.subr.mxu0 0.0
    %1020 = vmatpush2.msra.mxu0 0.0
    %1021 = vmatprep.subr.mxu0 0.0
    %1022 = vmatpush2.msra.mxu0 0.0
    %1023 = vmatprep.subr.mxu0 0.0
    %1024 = vmatpush2.msra.mxu0 0.0
    %1025 = vmatprep.subr.mxu0 0.0
    %1026 = vmatpush2.msra.mxu0 0.0
    %1027 = vmatprep.subr.mxu0 0.0
    %1028 = vmatpush2.msra.mxu0 0.0
    %1029 = vmatprep.subr.mxu0 0.0
    %1030 = vmatpush2.msra.mxu0 0.0
    %1031 = vmatprep.subr.mxu0 0.0
    %1032 = vmatpush2.msra.mxu0 0.0
    %1033 = vmatprep.subr.mxu0 0.0
    %1034 = vmatpush2.msra.mxu0 0.0
    %1035 = vmatprep.subr.mxu0 0.0
    %1036 = vmatpush2.msra.mxu0 0.0
    %1037 = vmatprep.subr.mxu0 0.0
    %1038 = vmatpush2.msra.mxu0 0.0
    %1039 = vmatprep.mubr.f32.mxu0 0.0
    %1040 = vmatmul.mubr.f32.gmra.mxu0 %v973
    %v1041 = vpop.f32.mrf.mxu0
    %v1042 = vadd.f32 %v119, %v1041
    %v1043 = vpop.f32.mrf.mxu0
    %1044 = vdwg.mxu0
    %1045 = vmatprep.subr.mxu0 0.0
    %1046 = vmatpush1.msra.mxu0 %v102
    %1047 = vmatprep.subr.mxu0 0.0
    %1048 = vmatpush1.msra.mxu0 %v101
    %1049 = vmatprep.subr.mxu0 0.0
    %1050 = vmatpush1.msra.mxu0 %v100
    %1051 = vmatprep.subr.mxu0 0.0
    %1052 = vmatpush1.msra.mxu0 %v99
    %1053 = vmatprep.subr.mxu0 0.0
    %1054 = vmatpush1.msra.mxu0 %v98
    %1055 = vmatprep.subr.mxu0 0.0
    %1056 = vmatpush1.msra.mxu0 %v97
    %1057 = vmatprep.subr.mxu0 0.0
    %1058 = vmatpush1.msra.mxu0 %v96
    %1059 = vmatprep.subr.mxu0 0.0
    %1060 = vmatpush1.msra.mxu0 %v95
    %1061 = vmatprep.subr.mxu0 0.0
    %1062 = vmatpush1.msra.mxu0 %v94
    %1063 = vmatprep.subr.mxu0 0.0
    %1064 = vmatpush1.msra.mxu0 %v93
    %1065 = vmatprep.subr.mxu0 0.0
    %1066 = vmatpush1.msra.mxu0 %v92
    %1067 = vmatprep.subr.mxu0 0.0
    %1068 = vmatpush1.msra.mxu0 %v91
    %1069 = vmatprep.subr.mxu0 0.0
    %1070 = vmatpush1.msra.mxu0 %v90
    %1071 = vmatprep.subr.mxu0 0.0
    %1072 = vmatpush1.msra.mxu0 %v89
    %1073 = vmatprep.subr.mxu0 0.0
    %1074 = vmatpush1.msra.mxu0 %v88
    %1075 = vmatprep.subr.mxu0 0.0
    %1076 = vmatpush1.msra.mxu0 %v87
    %1077 = vmatprep.subr.mxu0 0.0
    %1078 = vmatpush2.msra.mxu0 0.0
    %1079 = vmatprep.subr.mxu0 0.0
    %1080 = vmatpush2.msra.mxu0 0.0
    %1081 = vmatprep.subr.mxu0 0.0
    %1082 = vmatpush2.msra.mxu0 0.0
    %1083 = vmatprep.subr.mxu0 0.0
    %1084 = vmatpush2.msra.mxu0 0.0
    %1085 = vmatprep.subr.mxu0 0.0
    %1086 = vmatpush2.msra.mxu0 0.0
    %1087 = vmatprep.subr.mxu0 0.0
    %1088 = vmatpush2.msra.mxu0 0.0
    %1089 = vmatprep.subr.mxu0 0.0
    %1090 = vmatpush2.msra.mxu0 0.0
    %1091 = vmatprep.subr.mxu0 0.0
    %1092 = vmatpush2.msra.mxu0 0.0
    %1093 = vmatprep.subr.mxu0 0.0
    %1094 = vmatpush2.msra.mxu0 0.0
    %1095 = vmatprep.subr.mxu0 0.0
    %1096 = vmatpush2.msra.mxu0 0.0
    %1097 = vmatprep.subr.mxu0 0.0
    %1098 = vmatpush2.msra.mxu0 0.0
    %1099 = vmatprep.subr.mxu0 0.0
    %1100 = vmatpush2.msra.mxu0 0.0
    %1101 = vmatprep.subr.mxu0 0.0
    %1102 = vmatpush2.msra.mxu0 0.0
    %1103 = vmatprep.subr.mxu0 0.0
    %1104 = vmatpush2.msra.mxu0 0.0
    %1105 = vmatprep.subr.mxu0 0.0
    %1106 = vmatpush2.msra.mxu0 0.0
    %1107 = vmatprep.subr.mxu0 0.0
    %1108 = vmatpush2.msra.mxu0 0.0
    %1109 = vmatprep.mubr.f32.mxu0 0.0
    %1110 = vmatmul.mubr.f32.gmra.mxu0 %v1042
    %v1111 = vpop.f32.mrf.mxu0
    %v1112 = vadd.f32 %v199, %v1111
    %v1113 = vpop.f32.mrf.mxu0
    %1114 = vdwg.mxu0
    %v1115 = vsel %vm271, %v1112, -inf
    %1116 = vmax.xlane.f32.xlu0 %v1115
    %v1117 = vpop.xlane.xlu0 %1116
    %v1118 = vsub.f32 %v1112, %v1117
    %v1119 = vmul.f32 %v1118, 1.442695
    %v1120 = vpow.pop %v1119
    %v1121 = vsel %vm271, %v1120, 0.0
    %1122 = vadd.xlane.f32.xlu0 %v1121
    %v1123 = vpop.xlane.xlu0 %1122
    %v1124 = vlog2.pop %v1123
    %v1125 = vmul.f32 %v1124, 0.6931472
    %v1126 = vadd.f32 %v1125, %v1117
    %v1127 = vsub.f32 %v1112, %v1126
    %s1128 = scalar_lea.vmem [#allocation11], 10
    %1129 = vst [vmem:[%s1128] sm:$0x3] %v1127
    %s1130 = scalar_lea.vmem [#allocation12], 10
    %1131 = vst [vmem:[%s1130] sm:$0x3] %v1042
    %s1132 = scalar_lea.vmem [#allocation3], 12
    %v1133 = vld [vmem:[%s1132] sm:$0x3]
    %1134 = vst.msk [vmem:[#allocation2] sm:$0x3] %vm106, %v1133
    %1136 = vrot.lane.b32.xlu0 %v1042, 16
    %v1137 = vpop.permute.xlu0 %1136
    %1139 = vst.msk [vmem:[#allocation2] sm:$0x3] %vm112, %v1137
    %v1140 = vld [vmem:[#allocation2] sm:$0x3]
    %v1142 = vsel %vm121, %v1140, 0
    %1144 = vmatprep.subr.mxu0 0.0
    %1145 = vmatpush1.msra.mxu0 0.0
    %1146 = vmatprep.subr.mxu0 0.0
    %1147 = vmatpush1.msra.mxu0 0.0
    %1148 = vmatprep.subr.mxu0 0.0
    %1149 = vmatpush1.msra.mxu0 0.0
    %1150 = vmatprep.subr.mxu0 0.0
    %1151 = vmatpush1.msra.mxu0 0.0
    %1152 = vmatprep.subr.mxu0 0.0
    %1153 = vmatpush1.msra.mxu0 0.0
    %1154 = vmatprep.subr.mxu0 0.0
    %1155 = vmatpush1.msra.mxu0 0.0
    %1156 = vmatprep.subr.mxu0 0.0
    %1157 = vmatpush1.msra.mxu0 0.0
    %1158 = vmatprep.subr.mxu0 0.0
    %1159 = vmatpush1.msra.mxu0 0.0
    %1160 = vmatprep.subr.mxu0 0.0
    %1161 = vmatpush1.msra.mxu0 0.0
    %1162 = vmatprep.subr.mxu0 0.0
    %1163 = vmatpush1.msra.mxu0 0.0
    %1164 = vmatprep.subr.mxu0 0.0
    %1165 = vmatpush1.msra.mxu0 %v85
    %1166 = vmatprep.subr.mxu0 0.0
    %1167 = vmatpush1.msra.mxu0 %v84
    %1168 = vmatprep.subr.mxu0 0.0
    %1169 = vmatpush1.msra.mxu0 %v83
    %1170 = vmatprep.subr.mxu0 0.0
    %1171 = vmatpush1.msra.mxu0 %v82
    %1172 = vmatprep.subr.mxu0 0.0
    %1173 = vmatpush1.msra.mxu0 %v81
    %1174 = vmatprep.subr.mxu0 0.0
    %1175 = vmatpush1.msra.mxu0 %v80
    %1176 = vmatprep.subr.mxu0 0.0
    %1177 = vmatpush2.msra.mxu0 0.0
    %1178 = vmatprep.subr.mxu0 0.0
    %1179 = vmatpush2.msra.mxu0 0.0
    %1180 = vmatprep.subr.mxu0 0.0
    %1181 = vmatpush2.msra.mxu0 0.0
    %1182 = vmatprep.subr.mxu0 0.0
    %1183 = vmatpush2.msra.mxu0 0.0
    %1184 = vmatprep.subr.mxu0 0.0
    %1185 = vmatpush2.msra.mxu0 0.0
    %1186 = vmatprep.subr.mxu0 0.0
    %1187 = vmatpush2.msra.mxu0 0.0
    %1188 = vmatprep.subr.mxu0 0.0
    %1189 = vmatpush2.msra.mxu0 0.0
    %1190 = vmatprep.subr.mxu0 0.0
    %1191 = vmatpush2.msra.mxu0 0.0
    %1192 = vmatprep.subr.mxu0 0.0
    %1193 = vmatpush2.msra.mxu0 0.0
    %1194 = vmatprep.subr.mxu0 0.0
    %1195 = vmatpush2.msra.mxu0 0.0
    %1196 = vmatprep.subr.mxu0 0.0
    %1197 = vmatpush2.msra.mxu0 0.0
    %1198 = vmatprep.subr.mxu0 0.0
    %1199 = vmatpush2.msra.mxu0 0.0
    %1200 = vmatprep.subr.mxu0 0.0
    %1201 = vmatpush2.msra.mxu0 0.0
    %1202 = vmatprep.subr.mxu0 0.0
    %1203 = vmatpush2.msra.mxu0 0.0
    %1204 = vmatprep.subr.mxu0 0.0
    %1205 = vmatpush2.msra.mxu0 0.0
    %1206 = vmatprep.subr.mxu0 0.0
    %1207 = vmatpush2.msra.mxu0 0.0
    %1208 = vmatprep.mubr.f32.mxu0 0.0
    %1209 = vmatmul.mubr.f32.gmra.mxu0 %v1142
    %v1210 = vpop.f32.mrf.mxu0
    %v1211 = vadd.f32 %v119, %v1210
    %v1212 = vpop.f32.mrf.mxu0
    %1213 = vdwg.mxu0
    %1214 = vmatprep.subr.mxu0 0.0
    %1215 = vmatpush1.msra.mxu0 %v102
    %1216 = vmatprep.subr.mxu0 0.0
    %1217 = vmatpush1.msra.mxu0 %v101
    %1218 = vmatprep.subr.mxu0 0.0
    %1219 = vmatpush1.msra.mxu0 %v100
    %1220 = vmatprep.subr.mxu0 0.0
    %1221 = vmatpush1.msra.mxu0 %v99
    %1222 = vmatprep.subr.mxu0 0.0
    %1223 = vmatpush1.msra.mxu0 %v98
    %1224 = vmatprep.subr.mxu0 0.0
    %1225 = vmatpush1.msra.mxu0 %v97
    %1226 = vmatprep.subr.mxu0 0.0
    %1227 = vmatpush1.msra.mxu0 %v96
    %1228 = vmatprep.subr.mxu0 0.0
    %1229 = vmatpush1.msra.mxu0 %v95
    %1230 = vmatprep.subr.mxu0 0.0
    %1231 = vmatpush1.msra.mxu0 %v94
    %1232 = vmatprep.subr.mxu0 0.0
    %1233 = vmatpush1.msra.mxu0 %v93
    %1234 = vmatprep.subr.mxu0 0.0
    %1235 = vmatpush1.msra.mxu0 %v92
    %1236 = vmatprep.subr.mxu0 0.0
    %1237 = vmatpush1.msra.mxu0 %v91
    %1238 = vmatprep.subr.mxu0 0.0
    %1239 = vmatpush1.msra.mxu0 %v90
    %1240 = vmatprep.subr.mxu0 0.0
    %1241 = vmatpush1.msra.mxu0 %v89
    %1242 = vmatprep.subr.mxu0 0.0
    %1243 = vmatpush1.msra.mxu0 %v88
    %1244 = vmatprep.subr.mxu0 0.0
    %1245 = vmatpush1.msra.mxu0 %v87
    %1246 = vmatprep.subr.mxu0 0.0
    %1247 = vmatpush2.msra.mxu0 0.0
    %1248 = vmatprep.subr.mxu0 0.0
    %1249 = vmatpush2.msra.mxu0 0.0
    %1250 = vmatprep.subr.mxu0 0.0
    %1251 = vmatpush2.msra.mxu0 0.0
    %1252 = vmatprep.subr.mxu0 0.0
    %1253 = vmatpush2.msra.mxu0 0.0
    %1254 = vmatprep.subr.mxu0 0.0
    %1255 = vmatpush2.msra.mxu0 0.0
    %1256 = vmatprep.subr.mxu0 0.0
    %1257 = vmatpush2.msra.mxu0 0.0
    %1258 = vmatprep.subr.mxu0 0.0
    %1259 = vmatpush2.msra.mxu0 0.0
    %1260 = vmatprep.subr.mxu0 0.0
    %1261 = vmatpush2.msra.mxu0 0.0
    %1262 = vmatprep.subr.mxu0 0.0
    %1263 = vmatpush2.msra.mxu0 0.0
    %1264 = vmatprep.subr.mxu0 0.0
    %1265 = vmatpush2.msra.mxu0 0.0
    %1266 = vmatprep.subr.mxu0 0.0
    %1267 = vmatpush2.msra.mxu0 0.0
    %1268 = vmatprep.subr.mxu0 0.0
    %1269 = vmatpush2.msra.mxu0 0.0
    %1270 = vmatprep.subr.mxu0 0.0
    %1271 = vmatpush2.msra.mxu0 0.0
    %1272 = vmatprep.subr.mxu0 0.0
    %1273 = vmatpush2.msra.mxu0 0.0
    %1274 = vmatprep.subr.mxu0 0.0
    %1275 = vmatpush2.msra.mxu0 0.0
    %1276 = vmatprep.subr.mxu0 0.0
    %1277 = vmatpush2.msra.mxu0 0.0
    %1278 = vmatprep.mubr.f32.mxu0 0.0
    %1279 = vmatmul.mubr.f32.gmra.mxu0 %v1211
    %v1280 = vpop.f32.mrf.mxu0
    %v1281 = vadd.f32 %v199, %v1280
    %v1282 = vpop.f32.mrf.mxu0
    %1283 = vdwg.mxu0
    %v1284 = vsel %vm271, %v1281, -inf
    %1285 = vmax.xlane.f32.xlu0 %v1284
    %v1286 = vpop.xlane.xlu0 %1285
    %v1287 = vsub.f32 %v1281, %v1286
    %v1288 = vmul.f32 %v1287, 1.442695
    %v1289 = vpow.pop %v1288
    %v1290 = vsel %vm271, %v1289, 0.0
    %1291 = vadd.xlane.f32.xlu0 %v1290
    %v1292 = vpop.xlane.xlu0 %1291
    %v1293 = vlog2.pop %v1292
    %v1294 = vmul.f32 %v1293, 0.6931472
    %v1295 = vadd.f32 %v1294, %v1286
    %v1296 = vsub.f32 %v1281, %v1295
    %s1297 = scalar_lea.vmem [#allocation11], 12
    %1298 = vst [vmem:[%s1297] sm:$0x3] %v1296
    %s1299 = scalar_lea.vmem [#allocation12], 12
    %1300 = vst [vmem:[%s1299] sm:$0x3] %v1211
    %s1301 = scalar_lea.vmem [#allocation3], 14
    %v1302 = vld [vmem:[%s1301] sm:$0x3]
    %1303 = vst.msk [vmem:[#allocation2] sm:$0x3] %vm106, %v1302
    %1305 = vrot.lane.b32.xlu0 %v1211, 16
    %v1306 = vpop.permute.xlu0 %1305
    %1308 = vst.msk [vmem:[#allocation2] sm:$0x3] %vm112, %v1306
    %v1309 = vld [vmem:[#allocation2] sm:$0x3]
    %v1311 = vsel %vm121, %v1309, 0
    %1313 = vmatprep.subr.mxu0 0.0
    %1314 = vmatpush1.msra.mxu0 0.0
    %1315 = vmatprep.subr.mxu0 0.0
    %1316 = vmatpush1.msra.mxu0 0.0
    %1317 = vmatprep.subr.mxu0 0.0
    %1318 = vmatpush1.msra.mxu0 0.0
    %1319 = vmatprep.subr.mxu0 0.0
    %1320 = vmatpush1.msra.mxu0 0.0
    %1321 = vmatprep.subr.mxu0 0.0
    %1322 = vmatpush1.msra.mxu0 0.0
    %1323 = vmatprep.subr.mxu0 0.0
    %1324 = vmatpush1.msra.mxu0 0.0
    %1325 = vmatprep.subr.mxu0 0.0
    %1326 = vmatpush1.msra.mxu0 0.0
    %1327 = vmatprep.subr.mxu0 0.0
    %1328 = vmatpush1.msra.mxu0 0.0
    %1329 = vmatprep.subr.mxu0 0.0
    %1330 = vmatpush1.msra.mxu0 0.0
    %1331 = vmatprep.subr.mxu0 0.0
    %1332 = vmatpush1.msra.mxu0 0.0
    %1333 = vmatprep.subr.mxu0 0.0
    %1334 = vmatpush1.msra.mxu0 %v85
    %1335 = vmatprep.subr.mxu0 0.0
    %1336 = vmatpush1.msra.mxu0 %v84
    %1337 = vmatprep.subr.mxu0 0.0
    %1338 = vmatpush1.msra.mxu0 %v83
    %1339 = vmatprep.subr.mxu0 0.0
    %1340 = vmatpush1.msra.mxu0 %v82
    %1341 = vmatprep.subr.mxu0 0.0
    %1342 = vmatpush1.msra.mxu0 %v81
    %1343 = vmatprep.subr.mxu0 0.0
    %1344 = vmatpush1.msra.mxu0 %v80
    %1345 = vmatprep.subr.mxu0 0.0
    %1346 = vmatpush2.msra.mxu0 0.0
    %1347 = vmatprep.subr.mxu0 0.0
    %1348 = vmatpush2.msra.mxu0 0.0
    %1349 = vmatprep.subr.mxu0 0.0
    %1350 = vmatpush2.msra.mxu0 0.0
    %1351 = vmatprep.subr.mxu0 0.0
    %1352 = vmatpush2.msra.mxu0 0.0
    %1353 = vmatprep.subr.mxu0 0.0
    %1354 = vmatpush2.msra.mxu0 0.0
    %1355 = vmatprep.subr.mxu0 0.0
    %1356 = vmatpush2.msra.mxu0 0.0
    %1357 = vmatprep.subr.mxu0 0.0
    %1358 = vmatpush2.msra.mxu0 0.0
    %1359 = vmatprep.subr.mxu0 0.0
    %1360 = vmatpush2.msra.mxu0 0.0
    %1361 = vmatprep.subr.mxu0 0.0
    %1362 = vmatpush2.msra.mxu0 0.0
    %1363 = vmatprep.subr.mxu0 0.0
    %1364 = vmatpush2.msra.mxu0 0.0
    %1365 = vmatprep.subr.mxu0 0.0
    %1366 = vmatpush2.msra.mxu0 0.0
    %1367 = vmatprep.subr.mxu0 0.0
    %1368 = vmatpush2.msra.mxu0 0.0
    %1369 = vmatprep.subr.mxu0 0.0
    %1370 = vmatpush2.msra.mxu0 0.0
    %1371 = vmatprep.subr.mxu0 0.0
    %1372 = vmatpush2.msra.mxu0 0.0
    %1373 = vmatprep.subr.mxu0 0.0
    %1374 = vmatpush2.msra.mxu0 0.0
    %1375 = vmatprep.subr.mxu0 0.0
    %1376 = vmatpush2.msra.mxu0 0.0
    %1377 = vmatprep.mubr.f32.mxu0 0.0
    %1378 = vmatmul.mubr.f32.gmra.mxu0 %v1311
    %v1379 = vpop.f32.mrf.mxu0
    %v1380 = vadd.f32 %v119, %v1379
    %v1381 = vpop.f32.mrf.mxu0
    %1382 = vdwg.mxu0
    %1383 = vmatprep.subr.mxu0 0.0
    %1384 = vmatpush1.msra.mxu0 %v102
    %1385 = vmatprep.subr.mxu0 0.0
    %1386 = vmatpush1.msra.mxu0 %v101
    %1387 = vmatprep.subr.mxu0 0.0
    %1388 = vmatpush1.msra.mxu0 %v100
    %1389 = vmatprep.subr.mxu0 0.0
    %1390 = vmatpush1.msra.mxu0 %v99
    %1391 = vmatprep.subr.mxu0 0.0
    %1392 = vmatpush1.msra.mxu0 %v98
    %1393 = vmatprep.subr.mxu0 0.0
    %1394 = vmatpush1.msra.mxu0 %v97
    %1395 = vmatprep.subr.mxu0 0.0
    %1396 = vmatpush1.msra.mxu0 %v96
    %1397 = vmatprep.subr.mxu0 0.0
    %1398 = vmatpush1.msra.mxu0 %v95
    %1399 = vmatprep.subr.mxu0 0.0
    %1400 = vmatpush1.msra.mxu0 %v94
    %1401 = vmatprep.subr.mxu0 0.0
    %1402 = vmatpush1.msra.mxu0 %v93
    %1403 = vmatprep.subr.mxu0 0.0
    %1404 = vmatpush1.msra.mxu0 %v92
    %1405 = vmatprep.subr.mxu0 0.0
    %1406 = vmatpush1.msra.mxu0 %v91
    %1407 = vmatprep.subr.mxu0 0.0
    %1408 = vmatpush1.msra.mxu0 %v90
    %1409 = vmatprep.subr.mxu0 0.0
    %1410 = vmatpush1.msra.mxu0 %v89
    %1411 = vmatprep.subr.mxu0 0.0
    %1412 = vmatpush1.msra.mxu0 %v88
    %1413 = vmatprep.subr.mxu0 0.0
    %1414 = vmatpush1.msra.mxu0 %v87
    %1415 = vmatprep.subr.mxu0 0.0
    %1416 = vmatpush2.msra.mxu0 0.0
    %1417 = vmatprep.subr.mxu0 0.0
    %1418 = vmatpush2.msra.mxu0 0.0
    %1419 = vmatprep.subr.mxu0 0.0
    %1420 = vmatpush2.msra.mxu0 0.0
    %1421 = vmatprep.subr.mxu0 0.0
    %1422 = vmatpush2.msra.mxu0 0.0
    %1423 = vmatprep.subr.mxu0 0.0
    %1424 = vmatpush2.msra.mxu0 0.0
    %1425 = vmatprep.subr.mxu0 0.0
    %1426 = vmatpush2.msra.mxu0 0.0
    %1427 = vmatprep.subr.mxu0 0.0
    %1428 = vmatpush2.msra.mxu0 0.0
    %1429 = vmatprep.subr.mxu0 0.0
    %1430 = vmatpush2.msra.mxu0 0.0
    %1431 = vmatprep.subr.mxu0 0.0
    %1432 = vmatpush2.msra.mxu0 0.0
    %1433 = vmatprep.subr.mxu0 0.0
    %1434 = vmatpush2.msra.mxu0 0.0
    %1435 = vmatprep.subr.mxu0 0.0
    %1436 = vmatpush2.msra.mxu0 0.0
    %1437 = vmatprep.subr.mxu0 0.0
    %1438 = vmatpush2.msra.mxu0 0.0
    %1439 = vmatprep.subr.mxu0 0.0
    %1440 = vmatpush2.msra.mxu0 0.0
    %1441 = vmatprep.subr.mxu0 0.0
    %1442 = vmatpush2.msra.mxu0 0.0
    %1443 = vmatprep.subr.mxu0 0.0
    %1444 = vmatpush2.msra.mxu0 0.0
    %1445 = vmatprep.subr.mxu0 0.0
    %1446 = vmatpush2.msra.mxu0 0.0
    %1447 = vmatprep.mubr.f32.mxu0 0.0
    %1448 = vmatmul.mubr.f32.gmra.mxu0 %v1380
    %v1449 = vpop.f32.mrf.mxu0
    %v1450 = vadd.f32 %v199, %v1449
    %v1451 = vpop.f32.mrf.mxu0
    %1452 = vdwg.mxu0
    %v1453 = vsel %vm271, %v1450, -inf
    %1454 = vmax.xlane.f32.xlu0 %v1453
    %v1455 = vpop.xlane.xlu0 %1454
    %v1456 = vsub.f32 %v1450, %v1455
    %v1457 = vmul.f32 %v1456, 1.442695
    %v1458 = vpow.pop %v1457
    %v1459 = vsel %vm271, %v1458, 0.0
    %1460 = vadd.xlane.f32.xlu0 %v1459
    %v1461 = vpop.xlane.xlu0 %1460
    %v1462 = vlog2.pop %v1461
    %v1463 = vmul.f32 %v1462, 0.6931472
    %v1464 = vadd.f32 %v1463, %v1455
    %v1465 = vsub.f32 %v1450, %v1464
    %s1466 = scalar_lea.vmem [#allocation11], 14
    %1467 = vst [vmem:[%s1466] sm:$0x3] %v1465
    %s1468 = scalar_lea.vmem [#allocation12], 14
    %1469 = vst [vmem:[%s1468] sm:$0x3] %v1380
    // Predicated region
    $region42: #{tpu_custom_call.1} parent=1 // pred_check
      _
    $region43: #{tpu_custom_call.1} parent=1 // pred_check_branch
      %1471 = sbr.rel (0) target = $region45
    $region44: #{tpu_custom_call.1} parent=1 // pred_region
      %s1473 = ssub.s32 256, 256
      %1474 = vsyncadd [#allocation5], %s1473
      %s1475 = sshll.u32 [#allocation11], 4
      %s1476 = int_to_ptr.vmem [resolvable:$true] %s1475
      %1481 = dma.vmem_to_hbm [thread:$0]  %s1476, 256, %s6, [#allocation5], 32, 32, 2
    $region45: #{tpu_custom_call.1} parent=1 // pred_fallthru
      _
    // Predicated region
    $region46: #{tpu_custom_call.1} parent=1 // pred_check
      _
    $region47: #{tpu_custom_call.1} parent=1 // pred_check_branch
      %1483 = sbr.rel (0) target = $region49
    $region48: #{tpu_custom_call.1} parent=1 // pred_region
      %s1485 = ssub.s32 256, 256
      %1486 = vsyncadd [#allocation13], %s1485
      %s1487 = sshll.u32 [#allocation12], 4
      %s1488 = int_to_ptr.vmem [resolvable:$true] %s1487
      %1493 = dma.vmem_to_hbm [thread:$0]  %s1488, 256, %s7, [#allocation13], 32, 32, 2
    $region49: #{tpu_custom_call.1} parent=1 // pred_fallthru
      _
    // Predicated region
    $region50: #{tpu_custom_call.1} parent=1 // pred_check
      _
    $region51: #{tpu_custom_call.1} parent=1 // pred_check_branch
      %1495 = sbr.rel (0) target = $region53
    $region52: #{tpu_custom_call.1} parent=1 // pred_region
      %1496 = dma.done [#allocation5], 256
    $region53: #{tpu_custom_call.1} parent=1 // pred_fallthru
      _
    // Predicated region
    $region54: #{tpu_custom_call.1} parent=1 // pred_check
      _
    $region55: #{tpu_custom_call.1} parent=1 // pred_check_branch
      %1498 = sbr.rel (0) target = $region57
    $region56: #{tpu_custom_call.1} parent=1 // pred_region
      %1499 = dma.done [#allocation13], 256
    $region57: #{tpu_custom_call.1} parent=1 // pred_fallthru
      _
    %1500 = vsyncpa [#allocation4], 1
    %1501 = vsyncpa [#allocation7], 1
    %1502 = vsyncpa [#allocation10], 1
    %1503 = vsyncpa [#allocation5], 1
    %1504 = vsyncpa [#allocation13], 1

</llo_original>
